<compile_context>
chip_gen: v5e
topology: v5e:2x2
jax: 0.10.0
libtpu: 0.0.40
codegen_flags: <defaults>
</compile_context>

<pallas_src>
import functools

import jax
import jax.numpy as jnp
from jax.experimental import pallas as pl
from jax.experimental.pallas import tpu as pltpu

BN_EPS = 1e-5


# --------------------------------------------------------------------------
# Pass 1: 3x3 conv (im2col + single MXU matmul) + partial BN statistics
# --------------------------------------------------------------------------
def _conv_stats_kernel(x_ref, w_ref, y_ref, stats_ref, patch_ref):
    # x_ref     : (1, 1, TH+2, W+2, Cin)  halo'd NHWC input tile
    # w_ref     : (9*Cin, Cout)           conv weight, tap-major (dy, dx, cin)
    # y_ref     : (1, Cout, TH*W)         conv output, lane-dense NC(HW) layout
    # stats_ref : (1, 1, 2, Cout)         per-tile [sum, sum_of_squares]
    # patch_ref : VMEM scratch (TH*W, 9*Cin) im2col matrix
    _, _, thp2, wp, cin = x_ref.shape
    th, w = thp2 - 2, wp - 2

    xw = x_ref[0, 0, :, :, :]                            # (TH+2, W+2, Cin)

    # im2col gather: 9 shifted windows packed side by side in VMEM scratch.
    for dy in range(3):
        for dx in range(3):
            k = dy * 3 + dx
            tap = xw[dy:dy + th, dx:dx + w, :].reshape(th * w, cin)
            patch_ref[:, k * cin:(k + 1) * cin] = tap

    # Single MXU matmul, K = 9*Cin, f32 accumulation.  (conv bias dropped: it
    # is cancelled exactly by the BN mean subtraction.)
    acc = jnp.dot(patch_ref[...], w_ref[...],
                  preferred_element_type=jnp.float32)    # (TH*W, Cout)

    # Partial batch-norm statistics for this tile (finished in the wrapper).
    stats_ref[0, 0, 0:1, :] = jnp.sum(acc, axis=0, keepdims=True)
    stats_ref[0, 0, 1:2, :] = jnp.sum(acc * acc, axis=0, keepdims=True)

    # Lane-dense store: (Cout, TH*W) puts the 128-multiple spatial dim on lanes.
    y_ref[0] = acc.T.astype(y_ref.dtype)


# --------------------------------------------------------------------------
# Pass 2: fused BN apply + ReLU (single sweep, per-channel scale/shift hoisted)
# --------------------------------------------------------------------------
def _bn_relu_kernel(y_ref, scale_ref, shift_ref, o_ref):
    # y_ref/o_ref: (1, Cout, TH*W);  scale_ref/shift_ref: (Cout, 1)
    y = y_ref[0]
    o_ref[0] = jnp.maximum(y * scale_ref[...] + shift_ref[...],
                           0.0).astype(o_ref.dtype)


# --------------------------------------------------------------------------
# Wrapper (PyTorch NCHW in / NCHW out)
# --------------------------------------------------------------------------
def decode_block_forward(x_nchw, w_oihw, b, gamma, beta, *, row_tile=None):
    """DecodeBlock default path.  x_nchw: (N, Cin, H, W).  Returns NCHW f32.

    `b` (conv bias) is accepted for API parity but unused: with training-mode
    BatchNorm directly after the conv, a per-channel bias cancels exactly.
    """
    del b
    n, cin, h, w = x_nchw.shape
    cout = w_oihw.shape[0]

    if row_tile is None:
        row_tile = next(t for t in (32, 16, 8, 4, 2, 1) if h % t == 0)
    th = min(row_tile, h)
    assert h % th == 0, (h, th)
    n_t = h // th
    assert n_t == 1 or (th * w) % 128 == 0, (
        f"row_tile*W must be a multiple of 128 when tiling rows, got {th}*{w}")

    # NCHW -> padded NHWC, then overlapping row windows (1-row halo each side)
    # so every grid step sees a simple rectangular block.
    x_nhwc = jnp.transpose(x_nchw, (0, 2, 3, 1)).astype(jnp.float32)
    x_pad = jnp.pad(x_nhwc, ((0, 0), (1, 1), (1, 1), (0, 0)))
    x_halo = jnp.stack(
        [x_pad[:, t * th:t * th + th + 2] for t in range(n_t)], axis=1)
    # x_halo: (N, n_t, TH+2, W+2, Cin)

    # OIHW -> (9*Cin, Cout), tap-major (dy, dx, cin).
    w_mat = jnp.transpose(w_oihw, (2, 3, 1, 0)).reshape(9 * cin, cout)
    w_mat = w_mat.astype(jnp.float32)

    grid = (n, n_t)
    cparams = pltpu.CompilerParams(
        dimension_semantics=("parallel", "parallel"),
        vmem_limit_bytes=32 * 1024 * 1024)

    y, stats = pl.pallas_call(
        _conv_stats_kernel,
        grid=grid,
        in_specs=[
            pl.BlockSpec((1, 1, th + 2, w + 2, cin),
                         lambda i, j: (i, j, 0, 0, 0)),
            pl.BlockSpec((9 * cin, cout), lambda i, j: (0, 0)),
        ],
        out_specs=[
            pl.BlockSpec((1, cout, th * w), lambda i, j: (i, 0, j)),
            pl.BlockSpec((1, 1, 2, cout), lambda i, j: (i, j, 0, 0)),
        ],
        out_shape=[
            jax.ShapeDtypeStruct((n, cout, h * w), jnp.float32),
            jax.ShapeDtypeStruct((n, n_t, 2, cout), jnp.float32),
        ],
        scratch_shapes=[pltpu.VMEM((th * w, 9 * cin), jnp.float32)],
        compiler_params=cparams,
    )(x_halo, w_mat)

    # Finish BN stats (tiny per-channel math) and fold gamma/beta into a single
    # per-channel scale/shift, computed once (hoisted out of the kernels).
    count = float(n * h * w)
    tot = jnp.sum(stats, axis=(0, 1))                    # (2, Cout)
    mean = tot[0] / count
    var = jnp.maximum(tot[1] / count - mean * mean, 0.0)
    inv = jax.lax.rsqrt(var + BN_EPS)
    g32 = gamma.astype(jnp.float32)
    scale = (g32 * inv).reshape(cout, 1)
    shift = (beta.astype(jnp.float32) - mean * g32 * inv).reshape(cout, 1)

    out = pl.pallas_call(
        _bn_relu_kernel,
        grid=grid,
        in_specs=[
            pl.BlockSpec((1, cout, th * w), lambda i, j: (i, 0, j)),
            pl.BlockSpec((cout, 1), lambda i, j: (0, 0)),
            pl.BlockSpec((cout, 1), lambda i, j: (0, 0)),
        ],
        out_specs=pl.BlockSpec((1, cout, th * w), lambda i, j: (i, 0, j)),
        out_shape=jax.ShapeDtypeStruct((n, cout, h * w), jnp.float32),
        compiler_params=cparams,
    )(y, scale, shift)

    # (N, Cout, H*W) is already channel-major: a free reshape gives NCHW.
    return out.reshape(n, cout, h, w)


# --------------------------------------------------------------------------
# Pure-JAX reference (conv + bias + training-mode BN + ReLU), NCHW
# --------------------------------------------------------------------------
def reference_forward(x_nchw, w_oihw, b, gamma, beta):
    y = jax.lax.conv_general_dilated(
        x_nchw, w_oihw, window_strides=(1, 1), padding=((1, 1), (1, 1)),
        dimension_numbers=('NCHW', 'OIHW', 'NCHW'))
    y = y + b[None, :, None, None]
    mean = jnp.mean(y, axis=(0, 2, 3), keepdims=True)
    var = jnp.mean((y - mean) ** 2, axis=(0, 2, 3), keepdims=True)
    y = (y - mean) / jnp.sqrt(var + BN_EPS)
    y = y * gamma[None, :, None, None] + beta[None, :, None, None]
    return jnp.maximum(y, 0.0)


if __name__ == "__main__":
    # Small shapes consistent with the module: N=2, inplanes=4, planes=8, 16x16.
    N, Cin, Cout, H, W = 2, 4, 8, 16, 16

    key = jax.random.PRNGKey(0)
    kx, kw, kb, kg, kbe = jax.random.split(key, 5)

    x = jax.random.normal(kx, (N, Cin, H, W), dtype=jnp.float32)
    w = jax.random.normal(kw, (Cout, Cin, 3, 3), dtype=jnp.float32) * 0.1
    b = jax.random.normal(kb, (Cout,), dtype=jnp.float32) * 0.1
    gamma = 1.0 + 0.1 * jax.random.normal(kg, (Cout,), dtype=jnp.float32)
    beta = 0.1 * jax.random.normal(kbe, (Cout,), dtype=jnp.float32)

    fwd = jax.jit(functools.partial(decode_block_forward, row_tile=8))
    out = jax.block_until_ready(fwd(x, w, b, gamma, beta))

    ref = jax.block_until_ready(reference_forward(x, w, b, gamma, beta))
    assert out.shape == (N, Cout, H, W), out.shape
    max_err = float(jnp.max(jnp.abs(out - ref)))
    assert jnp.allclose(out, ref, atol=1e-4, rtol=1e-4), max_err

    print("KERNEL_OK")
</pallas_src>

<mosaic_0001>
module attributes {stable_mosaic.version = 11 : i64} {
  func.func @_conv_stats_kernel(%arg0: i32, %arg1: i32, %arg2: memref<1x1x10x18x4xf32, #tpu.memory_space<vmem>>, %arg3: memref<36x8xf32, #tpu.memory_space<vmem>>, %arg4: memref<1x8x128xf32, #tpu.memory_space<vmem>>, %arg5: memref<1x1x2x8xf32, #tpu.memory_space<vmem>>, %arg6: memref<128x36xf32, #tpu.memory_space<vmem>>) attributes {dimension_semantics = [#tpu.dimension_semantics<parallel>, #tpu.dimension_semantics<parallel>], iteration_bounds = array<i64: 2, 2>, scalar_prefetch = 0 : i64, scratch_operands = 1 : i64, tpu.core_type = #tpu.core_type<tc>, window_params = [{transform_indices = @transform_0, window_bounds = array<i64: 1, 1, 10, 18, 4>}, {pipeline_mode = #tpu.pipeline_mode<synchronous>, transform_indices = @transform_1, window_bounds = array<i64: 36, 8>}, {transform_indices = @transform_2, window_bounds = array<i64: 1, 8, 128>}, {transform_indices = @transform_3, window_bounds = array<i64: 1, 1, 2, 8>}]} {
    %c0 = arith.constant 0 : index
    %c0_0 = arith.constant 0 : index
    %c0_1 = arith.constant 0 : index
    %c0_2 = arith.constant 0 : index
    %c0_3 = arith.constant 0 : index
    %0 = vector.load %arg2[%c0, %c0_0, %c0_1, %c0_2, %c0_3] : memref<1x1x10x18x4xf32, #tpu.memory_space<vmem>>, vector<1x1x10x18x4xf32>
    %1 = vector.shape_cast %0 : vector<1x1x10x18x4xf32> to vector<10x18x4xf32>
    %2 = vector.extract_strided_slice %1 {offsets = [0, 0, 0], sizes = [8, 16, 4], strides = [1, 1, 1]} : vector<10x18x4xf32> to vector<8x16x4xf32>
    %3 = vector.shape_cast %2 : vector<8x16x4xf32> to vector<128x4xf32>
    %c0_4 = arith.constant 0 : index
    %c0_5 = arith.constant 0 : index
    %4 = vector.load %arg6[%c0_4, %c0_5] : memref<128x36xf32, #tpu.memory_space<vmem>>, vector<128x4xf32>
    tpu.vector_store %arg6[%c0_4, %c0_5], %3 {strides = array<i32>} : memref<128x36xf32, #tpu.memory_space<vmem>>, vector<128x4xf32>,
    %5 = vector.extract_strided_slice %1 {offsets = [0, 1, 0], sizes = [8, 16, 4], strides = [1, 1, 1]} : vector<10x18x4xf32> to vector<8x16x4xf32>
    %6 = vector.shape_cast %5 : vector<8x16x4xf32> to vector<128x4xf32>
    %c0_6 = arith.constant 0 : index
    %c4 = arith.constant 4 : index
    %7 = vector.load %arg6[%c0_6, %c4] : memref<128x36xf32, #tpu.memory_space<vmem>>, vector<128x4xf32>
    tpu.vector_store %arg6[%c0_6, %c4], %6 {strides = array<i32>} : memref<128x36xf32, #tpu.memory_space<vmem>>, vector<128x4xf32>,
    %8 = vector.extract_strided_slice %1 {offsets = [0, 2, 0], sizes = [8, 16, 4], strides = [1, 1, 1]} : vector<10x18x4xf32> to vector<8x16x4xf32>
    %9 = vector.shape_cast %8 : vector<8x16x4xf32> to vector<128x4xf32>
    %c0_7 = arith.constant 0 : index
    %c8 = arith.constant 8 : index
    %10 = vector.load %arg6[%c0_7, %c8] : memref<128x36xf32, #tpu.memory_space<vmem>>, vector<128x4xf32>
    tpu.vector_store %arg6[%c0_7, %c8], %9 {strides = array<i32>} : memref<128x36xf32, #tpu.memory_space<vmem>>, vector<128x4xf32>,
    %11 = vector.extract_strided_slice %1 {offsets = [1, 0, 0], sizes = [8, 16, 4], strides = [1, 1, 1]} : vector<10x18x4xf32> to vector<8x16x4xf32>
    %12 = vector.shape_cast %11 : vector<8x16x4xf32> to vector<128x4xf32>
    %c0_8 = arith.constant 0 : index
    %c12 = arith.constant 12 : index
    %13 = vector.load %arg6[%c0_8, %c12] : memref<128x36xf32, #tpu.memory_space<vmem>>, vector<128x4xf32>
    tpu.vector_store %arg6[%c0_8, %c12], %12 {strides = array<i32>} : memref<128x36xf32, #tpu.memory_space<vmem>>, vector<128x4xf32>,
    %14 = vector.extract_strided_slice %1 {offsets = [1, 1, 0], sizes = [8, 16, 4], strides = [1, 1, 1]} : vector<10x18x4xf32> to vector<8x16x4xf32>
    %15 = vector.shape_cast %14 : vector<8x16x4xf32> to vector<128x4xf32>
    %c0_9 = arith.constant 0 : index
    %c16 = arith.constant 16 : index
    %16 = vector.load %arg6[%c0_9, %c16] : memref<128x36xf32, #tpu.memory_space<vmem>>, vector<128x4xf32>
    tpu.vector_store %arg6[%c0_9, %c16], %15 {strides = array<i32>} : memref<128x36xf32, #tpu.memory_space<vmem>>, vector<128x4xf32>,
    %17 = vector.extract_strided_slice %1 {offsets = [1, 2, 0], sizes = [8, 16, 4], strides = [1, 1, 1]} : vector<10x18x4xf32> to vector<8x16x4xf32>
    %18 = vector.shape_cast %17 : vector<8x16x4xf32> to vector<128x4xf32>
    %c0_10 = arith.constant 0 : index
    %c20 = arith.constant 20 : index
    %19 = vector.load %arg6[%c0_10, %c20] : memref<128x36xf32, #tpu.memory_space<vmem>>, vector<128x4xf32>
    tpu.vector_store %arg6[%c0_10, %c20], %18 {strides = array<i32>} : memref<128x36xf32, #tpu.memory_space<vmem>>, vector<128x4xf32>,
    %20 = vector.extract_strided_slice %1 {offsets = [2, 0, 0], sizes = [8, 16, 4], strides = [1, 1, 1]} : vector<10x18x4xf32> to vector<8x16x4xf32>
    %21 = vector.shape_cast %20 : vector<8x16x4xf32> to vector<128x4xf32>
    %c0_11 = arith.constant 0 : index
    %c24 = arith.constant 24 : index
    %22 = vector.load %arg6[%c0_11, %c24] : memref<128x36xf32, #tpu.memory_space<vmem>>, vector<128x4xf32>
    tpu.vector_store %arg6[%c0_11, %c24], %21 {strides = array<i32>} : memref<128x36xf32, #tpu.memory_space<vmem>>, vector<128x4xf32>,
    %23 = vector.extract_strided_slice %1 {offsets = [2, 1, 0], sizes = [8, 16, 4], strides = [1, 1, 1]} : vector<10x18x4xf32> to vector<8x16x4xf32>
    %24 = vector.shape_cast %23 : vector<8x16x4xf32> to vector<128x4xf32>
    %c0_12 = arith.constant 0 : index
    %c28 = arith.constant 28 : index
    %25 = vector.load %arg6[%c0_12, %c28] : memref<128x36xf32, #tpu.memory_space<vmem>>, vector<128x4xf32>
    tpu.vector_store %arg6[%c0_12, %c28], %24 {strides = array<i32>} : memref<128x36xf32, #tpu.memory_space<vmem>>, vector<128x4xf32>,
    %26 = vector.extract_strided_slice %1 {offsets = [2, 2, 0], sizes = [8, 16, 4], strides = [1, 1, 1]} : vector<10x18x4xf32> to vector<8x16x4xf32>
    %27 = vector.shape_cast %26 : vector<8x16x4xf32> to vector<128x4xf32>
    %c0_13 = arith.constant 0 : index
    %c32 = arith.constant 32 : index
    %28 = vector.load %arg6[%c0_13, %c32] : memref<128x36xf32, #tpu.memory_space<vmem>>, vector<128x4xf32>
    tpu.vector_store %arg6[%c0_13, %c32], %27 {strides = array<i32>} : memref<128x36xf32, #tpu.memory_space<vmem>>, vector<128x4xf32>,
    %c0_14 = arith.constant 0 : index
    %c0_15 = arith.constant 0 : index
    %29 = vector.load %arg6[%c0_14, %c0_15] : memref<128x36xf32, #tpu.memory_space<vmem>>, vector<128x36xf32>
    %c0_16 = arith.constant 0 : index
    %c0_17 = arith.constant 0 : index
    %30 = vector.load %arg3[%c0_16, %c0_17] : memref<36x8xf32, #tpu.memory_space<vmem>>, vector<36x8xf32>
    %cst = arith.constant dense<0.000000e+00> : vector<128x8xf32>
    %31 = tpu.matmul %29, %30, %cst {dimension_numbers = #tpu.dot_dimension_numbers<[1], [0], [0], [1], [0, 0, 1, 1], [], []>} : vector<128x36xf32>, vector<36x8xf32>, vector<128x8xf32> -> vector<128x8xf32>
    %cst_18 = arith.constant dense<0.000000e+00> : vector<8xf32>
    %32 = vector.multi_reduction <add>, %31, %cst_18 [0] : vector<128x8xf32> to vector<8xf32>
    %33 = vector.shape_cast %32 : vector<8xf32> to vector<1x8xf32>
    %c0_19 = arith.constant 0 : index
    %c0_20 = arith.constant 0 : index
    %c0_21 = arith.constant 0 : index
    %c0_22 = arith.constant 0 : index
    %34 = vector.load %arg5[%c0_19, %c0_20, %c0_21, %c0_22] : memref<1x1x2x8xf32, #tpu.memory_space<vmem>>, vector<1x1x1x8xf32>
    %35 = vector.shape_cast %34 : vector<1x1x1x8xf32> to vector<1x8xf32>
    %36 = vector.shape_cast %33 : vector<1x8xf32> to vector<1x1x1x8xf32>
    tpu.vector_store %arg5[%c0_19, %c0_20, %c0_21, %c0_22], %36 {strides = array<i32>} : memref<1x1x2x8xf32, #tpu.memory_space<vmem>>, vector<1x1x1x8xf32>,
    %37 = arith.mulf %31, %31 : vector<128x8xf32>
    %cst_23 = arith.constant dense<0.000000e+00> : vector<8xf32>
    %38 = vector.multi_reduction <add>, %37, %cst_23 [0] : vector<128x8xf32> to vector<8xf32>
    %39 = vector.shape_cast %38 : vector<8xf32> to vector<1x8xf32>
    %c0_24 = arith.constant 0 : index
    %c0_25 = arith.constant 0 : index
    %c1 = arith.constant 1 : index
    %c0_26 = arith.constant 0 : index
    %40 = vector.load %arg5[%c0_24, %c0_25, %c1, %c0_26] : memref<1x1x2x8xf32, #tpu.memory_space<vmem>>, vector<1x1x1x8xf32>
    %41 = vector.shape_cast %40 : vector<1x1x1x8xf32> to vector<1x8xf32>
    %42 = vector.shape_cast %39 : vector<1x8xf32> to vector<1x1x1x8xf32>
    tpu.vector_store %arg5[%c0_24, %c0_25, %c1, %c0_26], %42 {strides = array<i32>} : memref<1x1x2x8xf32, #tpu.memory_space<vmem>>, vector<1x1x1x8xf32>,
    %43 = tpu.transpose %31, [1, 0] : vector<128x8xf32> -> vector<8x128xf32>
    %c0_27 = arith.constant 0 : index
    %c0_28 = arith.constant 0 : index
    %c0_29 = arith.constant 0 : index
    %44 = vector.load %arg4[%c0_27, %c0_28, %c0_29] : memref<1x8x128xf32, #tpu.memory_space<vmem>>, vector<1x8x128xf32>
    %45 = vector.shape_cast %44 : vector<1x8x128xf32> to vector<8x128xf32>
    %46 = vector.shape_cast %43 : vector<8x128xf32> to vector<1x8x128xf32>
    tpu.vector_store %arg4[%c0_27, %c0_28, %c0_29], %46 {strides = array<i32>} : memref<1x8x128xf32, #tpu.memory_space<vmem>>, vector<1x8x128xf32>,
    return
  }
  func.func @transform_0(%arg0: i32, %arg1: i32) -> (i32, i32, i32, i32, i32) {
    %c0_i32 = arith.constant 0 : i32
    %c0_i32_0 = arith.constant 0 : i32
    %c0_i32_1 = arith.constant 0 : i32
    %c0_i32_2 = arith.constant 0 : i32
    return %arg0, %arg1, %c0_i32, %c0_i32_0, %c0_i32_1 : i32, i32, i32, i32, i32
  }
  func.func @transform_1(%arg0: i32, %arg1: i32) -> (i32, i32) {
    %c0_i32 = arith.constant 0 : i32
    %c0_i32_0 = arith.constant 0 : i32
    %c0_i32_1 = arith.constant 0 : i32
    return %c0_i32, %c0_i32_0 : i32, i32
  }
  func.func @transform_2(%arg0: i32, %arg1: i32) -> (i32, i32, i32) {
    %c0_i32 = arith.constant 0 : i32
    %c0_i32_0 = arith.constant 0 : i32
    return %arg0, %c0_i32, %arg1 : i32, i32, i32
  }
  func.func @transform_3(%arg0: i32, %arg1: i32) -> (i32, i32, i32, i32) {
    %c0_i32 = arith.constant 0 : i32
    %c0_i32_0 = arith.constant 0 : i32
    %c0_i32_1 = arith.constant 0 : i32
    return %arg0, %arg1, %c0_i32, %c0_i32_0 : i32, i32, i32, i32
  }
}

module attributes {stable_mosaic.version = 11 : i64} {
  func.func @_bn_relu_kernel(%arg0: i32, %arg1: i32, %arg2: memref<1x8x128xf32, #tpu.memory_space<vmem>>, %arg3: memref<8x1xf32, #tpu.memory_space<vmem>>, %arg4: memref<8x1xf32, #tpu.memory_space<vmem>>, %arg5: memref<1x8x128xf32, #tpu.memory_space<vmem>>) attributes {dimension_semantics = [#tpu.dimension_semantics<parallel>, #tpu.dimension_semantics<parallel>], iteration_bounds = array<i64: 2, 2>, scalar_prefetch = 0 : i64, scratch_operands = 0 : i64, tpu.core_type = #tpu.core_type<tc>, window_params = [{transform_indices = @transform_0, window_bounds = array<i64: 1, 8, 128>}, {pipeline_mode = #tpu.pipeline_mode<synchronous>, transform_indices = @transform_1, window_bounds = array<i64: 8, 1>}, {pipeline_mode = #tpu.pipeline_mode<synchronous>, transform_indices = @transform_2, window_bounds = array<i64: 8, 1>}, {transform_indices = @transform_3, window_bounds = array<i64: 1, 8, 128>}]} {
    %c0 = arith.constant 0 : index
    %c0_0 = arith.constant 0 : index
    %c0_1 = arith.constant 0 : index
    %0 = vector.load %arg2[%c0, %c0_0, %c0_1] : memref<1x8x128xf32, #tpu.memory_space<vmem>>, vector<1x8x128xf32>
    %1 = vector.shape_cast %0 : vector<1x8x128xf32> to vector<8x128xf32>
    %c0_2 = arith.constant 0 : index
    %c0_3 = arith.constant 0 : index
    %2 = vector.load %arg3[%c0_2, %c0_3] : memref<8x1xf32, #tpu.memory_space<vmem>>, vector<8x1xf32>
    %3 = vector.broadcast %2 : vector<8x1xf32> to vector<8x128xf32>
    %4 = arith.mulf %1, %3 : vector<8x128xf32>
    %c0_4 = arith.constant 0 : index
    %c0_5 = arith.constant 0 : index
    %5 = vector.load %arg4[%c0_4, %c0_5] : memref<8x1xf32, #tpu.memory_space<vmem>>, vector<8x1xf32>
    %6 = vector.broadcast %5 : vector<8x1xf32> to vector<8x128xf32>
    %7 = arith.addf %4, %6 : vector<8x128xf32>
    %cst = arith.constant 0.000000e+00 : f32
    %8 = vector.broadcast %cst : f32 to vector<8x128xf32>
    %9 = arith.maximumf %7, %8 : vector<8x128xf32>
    %c0_6 = arith.constant 0 : index
    %c0_7 = arith.constant 0 : index
    %c0_8 = arith.constant 0 : index
    %10 = vector.load %arg5[%c0_6, %c0_7, %c0_8] : memref<1x8x128xf32, #tpu.memory_space<vmem>>, vector<1x8x128xf32>
    %11 = vector.shape_cast %10 : vector<1x8x128xf32> to vector<8x128xf32>
    %12 = vector.shape_cast %9 : vector<8x128xf32> to vector<1x8x128xf32>
    tpu.vector_store %arg5[%c0_6, %c0_7, %c0_8], %12 {strides = array<i32>} : memref<1x8x128xf32, #tpu.memory_space<vmem>>, vector<1x8x128xf32>,
    return
  }
  func.func @transform_0(%arg0: i32, %arg1: i32) -> (i32, i32, i32) {
    %c0_i32 = arith.constant 0 : i32
    %c0_i32_0 = arith.constant 0 : i32
    return %arg0, %c0_i32, %arg1 : i32, i32, i32
  }
  func.func @transform_1(%arg0: i32, %arg1: i32) -> (i32, i32) {
    %c0_i32 = arith.constant 0 : i32
    %c0_i32_0 = arith.constant 0 : i32
    %c0_i32_1 = arith.constant 0 : i32
    return %c0_i32, %c0_i32_0 : i32, i32
  }
  func.func @transform_2(%arg0: i32, %arg1: i32) -> (i32, i32) {
    %c0_i32 = arith.constant 0 : i32
    %c0_i32_0 = arith.constant 0 : i32
    %c0_i32_1 = arith.constant 0 : i32
    return %c0_i32, %c0_i32_0 : i32, i32
  }
  func.func @transform_3(%arg0: i32, %arg1: i32) -> (i32, i32, i32) {
    %c0_i32 = arith.constant 0 : i32
    %c0_i32_0 = arith.constant 0 : i32
    return %arg0, %c0_i32, %arg1 : i32, i32, i32
  }
}

</mosaic_0001>

<llo_original>
// kernel: decode_block_forward.3
$region0: #{decode_block_forward.3}
  #allocation0 [shape = 'u32[]', space=smem, size = 0x4, offset = 0x4, fixed_abs, tag = 'smem constant byte address 0x4 - core index']
  #allocation1 [shape = 'u32[72,128]{1,0:T(1,128)}', space=vmem, size = 0x9000, scoped, tag = 'internal scratch']
  %s0 = inlined_call_operand.vmem [shape: f32[2,8,256], index: 0, kind: input, shape index: {}]
  %s1 = inlined_call_operand.vmem [shape: f32[8,1], index: 1, kind: input, shape index: {}]
  %s2 = inlined_call_operand.vmem [shape: f32[8,1], index: 2, kind: input, shape index: {}]
  %s3 = inlined_call_operand.vmem [shape: f32[2,8,256], index: 3, kind: output, shape index: {}]
  %s4 = sld [smem:[#allocation0]]
  $region45: #{decode_block_forward.3} parent=0
    _
  %s6 = ssub.s32 1, %s4
  %s7 = scalar_select 0, %s6, %s4
  loop: start=0, step=1, limit=6
  $region2: #{decode_block_forward.3} parent=0 // loop_pre_header
    _
  $region3: #{decode_block_forward.3} parent=0 // loop_header
    %s9 = sphi 0, %s13
    %p10 = scmp.ge.s32.totalorder %s9, 6
    %s16 = sphi 0, %s28
    %s17 = sphi 0, %s24
    %s18 = sphi 0, %s16
    %s19 = sphi 0, %s17
    %s20 = sphi 0, %s18
    %s21 = sphi 0, %s19
    %s33 = sphi 0, %s35
    %s36 = sphi 0, %s33
    %s37 = sphi 0, %s36
    %s53 = sphi 0, %s37
    %s57 = sphi 0, %s57
    %s59 = sphi 0, %s57
    %s60 = sphi 0, %s59
    %s74 = sphi 0, %s60
    %s78 = sphi 0, %s78
    %s80 = sphi 0, %s78
    %s81 = sphi 0, %s80
    %s95 = sphi 0, %s81
    %s103 = sphi 0, %s105
    %s106 = sphi 0, %s103
    %s107 = sphi 0, %s106
    %s123 = sphi 0, %s107
  $region4: #{decode_block_forward.3} parent=0 // loop_header_branch
    %12 = sbr.rel (%p10) target = $region8
  $region5: #{decode_block_forward.3} parent=0 // loop_body
    %s14 = ssub.s32 %s9, 1
    %s15 = ssub.s32 %s9, 2
    %s22 = sadd.s32 1, %s17
    %p23 = scmp.ge.s32.totalorder %s22, 2
    %s24 = scalar_select %p23, 0, %s22
    %s25 = sadd.s32 1, %s16
    %s26 = scalar_select %p23, %s25, %s16
    %p27 = scmp.ge.s32.totalorder %s26, 2
    %s28 = scalar_select %p27, 0, %s26
    %s29 = ssub.s32 %s16, %s28
    %s30 = ssub.s32 %s17, %s24
    %s31 = sor.u32 %s29, %s30
    %p32 = scmp.eq.s32.totalorder %s31, 0
    %s34 = sadd.s32 %s33, 1
    %s35 = scalar_select %p32, %s33, %s34
    %p38 = pneg %p32
    %p39 = scmp.eq.s32.totalorder %s9, 3
    %p40 = por %p38, %p39
    %p41 = scmp.ne.s32.totalorder %s33, %s36
    %p42 = scmp.eq.s32.totalorder %s9, 0
    %p43 = por %p41, %p42
    %p44 = scmp.ne.s32.totalorder %s33, %s36
    %p45 = scmp.eq.s32.totalorder %s14, 3
    %p46 = por %p44, %p45
    %p47 = scmp.ne.s32.totalorder %s36, %s37
    %p48 = scmp.eq.s32.totalorder %s14, 0
    %p49 = por %p47, %p48
    %p50 = scmp.ne.s32.totalorder %s36, %s37
    %p51 = scmp.eq.s32.totalorder %s15, 3
    %p52 = por %p50, %p51
    %p54 = scmp.ne.s32.totalorder %s37, %s53
    %p55 = scmp.eq.s32.totalorder %s15, 0
    %p56 = por %p54, %p55
    %s58 = sadd.s32 %s57, 1
    %p61 = scmp.eq.s32.totalorder %s9, 3
    %p62 = scmp.ne.s32.totalorder %s57, %s59
    %p63 = scmp.eq.s32.totalorder %s9, 0
    %p64 = por %p62, %p63
    %p65 = scmp.ne.s32.totalorder %s57, %s59
    %p66 = scmp.eq.s32.totalorder %s14, 3
    %p67 = por %p65, %p66
    %p68 = scmp.ne.s32.totalorder %s59, %s60
    %p69 = scmp.eq.s32.totalorder %s14, 0
    %p70 = por %p68, %p69
    %p71 = scmp.ne.s32.totalorder %s59, %s60
    %p72 = scmp.eq.s32.totalorder %s15, 3
    %p73 = por %p71, %p72
    %p75 = scmp.ne.s32.totalorder %s60, %s74
    %p76 = scmp.eq.s32.totalorder %s15, 0
    %p77 = por %p75, %p76
    %s79 = sadd.s32 %s78, 1
    %p82 = scmp.eq.s32.totalorder %s9, 3
    %p83 = scmp.ne.s32.totalorder %s78, %s80
    %p84 = scmp.eq.s32.totalorder %s9, 0
    %p85 = por %p83, %p84
    %p86 = scmp.ne.s32.totalorder %s78, %s80
    %p87 = scmp.eq.s32.totalorder %s14, 3
    %p88 = por %p86, %p87
    %p89 = scmp.ne.s32.totalorder %s80, %s81
    %p90 = scmp.eq.s32.totalorder %s14, 0
    %p91 = por %p89, %p90
    %p92 = scmp.ne.s32.totalorder %s80, %s81
    %p93 = scmp.eq.s32.totalorder %s15, 3
    %p94 = por %p92, %p93
    %p96 = scmp.ne.s32.totalorder %s81, %s95
    %p97 = scmp.eq.s32.totalorder %s15, 0
    %p98 = por %p96, %p97
    %s99 = ssub.s32 %s16, %s28
    %s100 = ssub.s32 %s17, %s24
    %s101 = sor.u32 %s99, %s100
    %p102 = scmp.eq.s32.totalorder %s101, 0
    %s104 = sadd.s32 %s103, 1
    %s105 = scalar_select %p102, %s103, %s104
    %p108 = pneg %p102
    %p109 = scmp.eq.s32.totalorder %s9, 3
    %p110 = por %p108, %p109
    %p111 = scmp.ne.s32.totalorder %s103, %s106
    %p112 = scmp.eq.s32.totalorder %s9, 0
    %p113 = por %p111, %p112
    %p114 = scmp.ne.s32.totalorder %s103, %s106
    %p115 = scmp.eq.s32.totalorder %s14, 3
    %p116 = por %p114, %p115
    %p117 = scmp.ne.s32.totalorder %s106, %s107
    %p118 = scmp.eq.s32.totalorder %s14, 0
    %p119 = por %p117, %p118
    %p120 = scmp.ne.s32.totalorder %s106, %s107
    %p121 = scmp.eq.s32.totalorder %s15, 3
    %p122 = por %p120, %p121
    %p124 = scmp.ne.s32.totalorder %s107, %s123
    %p125 = scmp.eq.s32.totalorder %s15, 0
    %p126 = por %p124, %p125
    %p127 = scmp.le.s32.totalorder 1, %s9
    %p128 = scmp.lt.s32.totalorder %s9, 5
    %p129 = pnand %p127, %p128
    %p130 = pneg %p129
    // Predicated region
    $region9: #{decode_block_forward.3} parent=5 // pred_check
      _
    $region10: #{decode_block_forward.3} parent=5 // pred_check_branch
      %132 = sbr.rel (%p129) target = $region12
    $region11: #{decode_block_forward.3} parent=5 // pred_region
      %s133 = ssub.s32 %s9, 1
      // Predicated region
      $region13: #{decode_block_forward.3} parent=11 // pred_check
        %p134 = pneg %p70
      $region14: #{decode_block_forward.3} parent=11 // pred_check_branch
        %136 = sbr.rel (%p134) target = $region16
      $region15: #{decode_block_forward.3} parent=11 // pred_region
        _
      $region16: #{decode_block_forward.3} parent=11 // pred_fallthru
        _
      // Predicated region
      $region17: #{decode_block_forward.3} parent=11 // pred_check
        %p137 = pneg %p91
      $region18: #{decode_block_forward.3} parent=11 // pred_check_branch
        %139 = sbr.rel (%p137) target = $region20
      $region19: #{decode_block_forward.3} parent=11 // pred_region
        _
      $region20: #{decode_block_forward.3} parent=11 // pred_fallthru
        _
    $region12: #{decode_block_forward.3} parent=5 // pred_fallthru
      _
    %p140 = scmp.lt.s32.totalorder %s9, 4
    // Predicated region
    $region21: #{decode_block_forward.3} parent=5 // pred_check
      %p141 = pneg %p140
    $region22: #{decode_block_forward.3} parent=5 // pred_check_branch
      %143 = sbr.rel (%p141) target = $region24
    $region23: #{decode_block_forward.3} parent=5 // pred_region
      // Predicated region
      $region25: #{decode_block_forward.3} parent=23 // pred_check
        %p144 = pneg %p43
      $region26: #{decode_block_forward.3} parent=23 // pred_check_branch
        %146 = sbr.rel (%p144) target = $region28
      $region27: #{decode_block_forward.3} parent=23 // pred_region
        %p147 = scmp.lt.s32.totalorder %s16, 1
        %s148 = scalar_select %p147, %s16, 1
        %p149 = scmp.lt.s32.totalorder %s17, 1
        %s150 = scalar_select %p149, %s17, 1
        %s151 = smul.addr %s148, 2
        %s152 = sadd.s32 %s150, %s151
        %s153 = smul.addr %s152, 8
        %s154 = scalar_lea.vmem %s0, %s153
      $region28: #{decode_block_forward.3} parent=23 // pred_fallthru
        _
    $region24: #{decode_block_forward.3} parent=5 // pred_fallthru
      _
    %p155 = scmp.le.s32.totalorder 1, %s9
    %p156 = scmp.lt.s32.totalorder %s9, 5
    %p157 = pnand %p155, %p156
    %p158 = pneg %p157
    // Predicated region
    $region29: #{decode_block_forward.3} parent=5 // pred_check
      _
    $region30: #{decode_block_forward.3} parent=5 // pred_check_branch
      %160 = sbr.rel (%p157) target = $region32
    $region31: #{decode_block_forward.3} parent=5 // pred_region
      %s161 = ssub.s32 %s9, 1
      %p162 = scmp.lt.s32.totalorder %s18, 1
      %s163 = scalar_select %p162, %s18, 1
      %p164 = scmp.lt.s32.totalorder %s19, 1
      %s165 = scalar_select %p164, %s19, 1
      %s166 = smul.addr %s163, 2
      %s167 = sadd.s32 %s165, %s166
      %s168 = smul.addr %s167, 8
      %s169 = scalar_lea.vmem %s0, %s168
      %p170 = pneg %p49
      %p171 = pneg %p46
      %p172 = pneg %p70
      %p173 = pneg %p67
      %p174 = pneg %p91
      %p175 = pneg %p88
      %p176 = pneg %p119
      %p177 = pneg %p116
      %p178 = scmp.lt.s32.totalorder %s18, 1
      %s179 = scalar_select %p178, %s18, 1
      %p180 = scmp.lt.s32.totalorder %s19, 1
      %s181 = scalar_select %p180, %s19, 1
      %s182 = smul.addr %s179, 2
      %s183 = sadd.s32 %s181, %s182
      %s184 = smul.addr %s183, 8
      %s185 = scalar_lea.vmem %s3, %s184
      %p186 = scmp.lt.s32.totalorder %s18, 1
      %s187 = scalar_select %p186, %s18, 1
      %p188 = scmp.lt.s32.totalorder %s19, 1
      %s189 = scalar_select %p188, %s19, 1
      %s190 = smul.addr %s187, 2
      %s191 = sadd.s32 %s189, %s190
      %s192 = smul.addr %s191, 8
      %s193 = scalar_lea.vmem %s0, %s192
      %p194 = scmp.lt.s32.totalorder %s18, 1
      %s195 = scalar_select %p194, %s18, 1
      %p196 = scmp.lt.s32.totalorder %s19, 1
      %s197 = scalar_select %p196, %s19, 1
      %s198 = smul.addr %s195, 2
      %s199 = sadd.s32 %s197, %s198
      %s200 = smul.addr %s199, 8
      %s201 = scalar_lea.vmem %s3, %s200
      %v202 = vld [vmem:[%s193] sm:$0xff]
      %v203 = vld [vmem:[%s1] sm:$0xff]
      %205 = vset.pattern.permute.xlu0 0
      %206 = vperm.xlu0 %205, %v203
      %v207 = vpop.permute.xlu0 %206
      %v209 = vmul.f32 %v202, %v207
      %v210 = vld [vmem:[%s2] sm:$0xff]
      %212 = vset.pattern.permute.xlu0 0
      %213 = vperm.xlu0 %212, %v210
      %v214 = vpop.permute.xlu0 %213
      %v216 = vadd.f32 %v209, %v214
      %v217 = vmax.f32 %v216, 0.0
      %218 = vst [vmem:[%s201] sm:$0xff] %v217
      %p219 = scmp.lt.s32.totalorder %s18, 1
      %s220 = scalar_select %p219, %s18, 1
      %p221 = scmp.lt.s32.totalorder %s19, 1
      %s222 = scalar_select %p221, %s19, 1
      %s223 = smul.addr %s220, 2
      %s224 = sadd.s32 %s222, %s223
      %s225 = smul.addr %s224, 8
      %s226 = scalar_lea.vmem %s3, %s225
      // Predicated region
      $region33: #{decode_block_forward.3} parent=31 // pred_check
        %p227 = pneg %p116
      $region34: #{decode_block_forward.3} parent=31 // pred_check_branch
        %229 = sbr.rel (%p227) target = $region36
      $region35: #{decode_block_forward.3} parent=31 // pred_region
        _
      $region36: #{decode_block_forward.3} parent=31 // pred_fallthru
        _
    $region32: #{decode_block_forward.3} parent=5 // pred_fallthru
      _
    %p230 = scmp.le.s32.totalorder 2, %s9
    // Predicated region
    $region37: #{decode_block_forward.3} parent=5 // pred_check
      %p231 = pneg %p230
    $region38: #{decode_block_forward.3} parent=5 // pred_check_branch
      %233 = sbr.rel (%p231) target = $region40
    $region39: #{decode_block_forward.3} parent=5 // pred_region
      %s234 = ssub.s32 %s9, 2
      // Predicated region
      $region41: #{decode_block_forward.3} parent=39 // pred_check
        %p235 = pneg %p122
      $region42: #{decode_block_forward.3} parent=39 // pred_check_branch
        %237 = sbr.rel (%p235) target = $region44
      $region43: #{decode_block_forward.3} parent=39 // pred_region
        %p238 = scmp.lt.s32.totalorder %s20, 1
        %s239 = scalar_select %p238, %s20, 1
        %p240 = scmp.lt.s32.totalorder %s21, 1
        %s241 = scalar_select %p240, %s21, 1
        %s242 = smul.addr %s239, 2
        %s243 = sadd.s32 %s241, %s242
        %s244 = smul.addr %s243, 8
        %s245 = scalar_lea.vmem %s3, %s244
      $region44: #{decode_block_forward.3} parent=39 // pred_fallthru
        _
    $region40: #{decode_block_forward.3} parent=5 // pred_fallthru
      _
  $region6: #{decode_block_forward.3} parent=0 // loop_footer
    %s13 = sadd.s32 1, %s9
  $region7: #{decode_block_forward.3} parent=0 // loop_footer_branch
    %8 = sbr.rel target = $region3
  $region8: #{decode_block_forward.3} parent=0 // loop_exit
    _

// kernel: decode_block_forward.2
$region0: #{decode_block_forward.2}
  #allocation0 [shape = 'u32[]', space=smem, size = 0x4, offset = 0x4, fixed_abs, tag = 'smem constant byte address 0x4 - core index']
  #allocation1 [shape = 'u32[72,128]{1,0:T(1,128)}', space=vmem, size = 0x9000, scoped, tag = 'internal scratch']
  #allocation2 [shape = 'f32[128,36]{1,0:T(8,128)}', space=vmem, size = 0x10000, scoped, tag = 'scratch operand']
  %s0 = inlined_call_operand.vmem [shape: f32[2,2,10,18,4], index: 0, kind: input, shape index: {}]
  %s1 = inlined_call_operand.vmem [shape: f32[36,8], index: 1, kind: input, shape index: {}]
  %s2 = inlined_call_operand.vmem [shape: f32[2,8,256], index: 2, kind: output, shape index: {0}]
  %s3 = inlined_call_operand.vmem [shape: f32[2,2,2,8], index: 3, kind: output, shape index: {1}]
  %4 = xla_tuple %s2, %s3
  %s5 = sld [smem:[#allocation0]]
  $region49: #{decode_block_forward.2} parent=0
    _
  %s7 = ssub.s32 1, %s5
  %s8 = scalar_select 0, %s7, %s5
  loop: start=0, step=1, limit=6
  $region2: #{decode_block_forward.2} parent=0 // loop_pre_header
    _
  $region3: #{decode_block_forward.2} parent=0 // loop_header
    %s10 = sphi 0, %s14
    %p11 = scmp.ge.s32.totalorder %s10, 6
    %s17 = sphi 0, %s29
    %s18 = sphi 0, %s25
    %s19 = sphi 0, %s17
    %s20 = sphi 0, %s18
    %s21 = sphi 0, %s19
    %s22 = sphi 0, %s20
    %s34 = sphi 0, %s36
    %s37 = sphi 0, %s34
    %s38 = sphi 0, %s37
    %s54 = sphi 0, %s38
    %s58 = sphi 0, %s58
    %s60 = sphi 0, %s58
    %s61 = sphi 0, %s60
    %s75 = sphi 0, %s61
    %s83 = sphi 0, %s85
    %s86 = sphi 0, %s83
    %s87 = sphi 0, %s86
    %s103 = sphi 0, %s87
    %s111 = sphi 0, %s113
    %s114 = sphi 0, %s111
    %s115 = sphi 0, %s114
    %s131 = sphi 0, %s115
  $region4: #{decode_block_forward.2} parent=0 // loop_header_branch
    %13 = sbr.rel (%p11) target = $region8
  $region5: #{decode_block_forward.2} parent=0 // loop_body
    %s15 = ssub.s32 %s10, 1
    %s16 = ssub.s32 %s10, 2
    %s23 = sadd.s32 1, %s18
    %p24 = scmp.ge.s32.totalorder %s23, 2
    %s25 = scalar_select %p24, 0, %s23
    %s26 = sadd.s32 1, %s17
    %s27 = scalar_select %p24, %s26, %s17
    %p28 = scmp.ge.s32.totalorder %s27, 2
    %s29 = scalar_select %p28, 0, %s27
    %s30 = ssub.s32 %s17, %s29
    %s31 = ssub.s32 %s18, %s25
    %s32 = sor.u32 %s30, %s31
    %p33 = scmp.eq.s32.totalorder %s32, 0
    %s35 = sadd.s32 %s34, 1
    %s36 = scalar_select %p33, %s34, %s35
    %p39 = pneg %p33
    %p40 = scmp.eq.s32.totalorder %s10, 3
    %p41 = por %p39, %p40
    %p42 = scmp.ne.s32.totalorder %s34, %s37
    %p43 = scmp.eq.s32.totalorder %s10, 0
    %p44 = por %p42, %p43
    %p45 = scmp.ne.s32.totalorder %s34, %s37
    %p46 = scmp.eq.s32.totalorder %s15, 3
    %p47 = por %p45, %p46
    %p48 = scmp.ne.s32.totalorder %s37, %s38
    %p49 = scmp.eq.s32.totalorder %s15, 0
    %p50 = por %p48, %p49
    %p51 = scmp.ne.s32.totalorder %s37, %s38
    %p52 = scmp.eq.s32.totalorder %s16, 3
    %p53 = por %p51, %p52
    %p55 = scmp.ne.s32.totalorder %s38, %s54
    %p56 = scmp.eq.s32.totalorder %s16, 0
    %p57 = por %p55, %p56
    %s59 = sadd.s32 %s58, 1
    %p62 = scmp.eq.s32.totalorder %s10, 3
    %p63 = scmp.ne.s32.totalorder %s58, %s60
    %p64 = scmp.eq.s32.totalorder %s10, 0
    %p65 = por %p63, %p64
    %p66 = scmp.ne.s32.totalorder %s58, %s60
    %p67 = scmp.eq.s32.totalorder %s15, 3
    %p68 = por %p66, %p67
    %p69 = scmp.ne.s32.totalorder %s60, %s61
    %p70 = scmp.eq.s32.totalorder %s15, 0
    %p71 = por %p69, %p70
    %p72 = scmp.ne.s32.totalorder %s60, %s61
    %p73 = scmp.eq.s32.totalorder %s16, 3
    %p74 = por %p72, %p73
    %p76 = scmp.ne.s32.totalorder %s61, %s75
    %p77 = scmp.eq.s32.totalorder %s16, 0
    %p78 = por %p76, %p77
    %s79 = ssub.s32 %s17, %s29
    %s80 = ssub.s32 %s18, %s25
    %s81 = sor.u32 %s79, %s80
    %p82 = scmp.eq.s32.totalorder %s81, 0
    %s84 = sadd.s32 %s83, 1
    %s85 = scalar_select %p82, %s83, %s84
    %p88 = pneg %p82
    %p89 = scmp.eq.s32.totalorder %s10, 3
    %p90 = por %p88, %p89
    %p91 = scmp.ne.s32.totalorder %s83, %s86
    %p92 = scmp.eq.s32.totalorder %s10, 0
    %p93 = por %p91, %p92
    %p94 = scmp.ne.s32.totalorder %s83, %s86
    %p95 = scmp.eq.s32.totalorder %s15, 3
    %p96 = por %p94, %p95
    %p97 = scmp.ne.s32.totalorder %s86, %s87
    %p98 = scmp.eq.s32.totalorder %s15, 0
    %p99 = por %p97, %p98
    %p100 = scmp.ne.s32.totalorder %s86, %s87
    %p101 = scmp.eq.s32.totalorder %s16, 3
    %p102 = por %p100, %p101
    %p104 = scmp.ne.s32.totalorder %s87, %s103
    %p105 = scmp.eq.s32.totalorder %s16, 0
    %p106 = por %p104, %p105
    %s107 = ssub.s32 %s17, %s29
    %s108 = ssub.s32 %s18, %s25
    %s109 = sor.u32 %s107, %s108
    %p110 = scmp.eq.s32.totalorder %s109, 0
    %s112 = sadd.s32 %s111, 1
    %s113 = scalar_select %p110, %s111, %s112
    %p116 = pneg %p110
    %p117 = scmp.eq.s32.totalorder %s10, 3
    %p118 = por %p116, %p117
    %p119 = scmp.ne.s32.totalorder %s111, %s114
    %p120 = scmp.eq.s32.totalorder %s10, 0
    %p121 = por %p119, %p120
    %p122 = scmp.ne.s32.totalorder %s111, %s114
    %p123 = scmp.eq.s32.totalorder %s15, 3
    %p124 = por %p122, %p123
    %p125 = scmp.ne.s32.totalorder %s114, %s115
    %p126 = scmp.eq.s32.totalorder %s15, 0
    %p127 = por %p125, %p126
    %p128 = scmp.ne.s32.totalorder %s114, %s115
    %p129 = scmp.eq.s32.totalorder %s16, 3
    %p130 = por %p128, %p129
    %p132 = scmp.ne.s32.totalorder %s115, %s131
    %p133 = scmp.eq.s32.totalorder %s16, 0
    %p134 = por %p132, %p133
    %p135 = scmp.le.s32.totalorder 1, %s10
    %p136 = scmp.lt.s32.totalorder %s10, 5
    %p137 = pnand %p135, %p136
    %p138 = pneg %p137
    // Predicated region
    $region9: #{decode_block_forward.2} parent=5 // pred_check
      _
    $region10: #{decode_block_forward.2} parent=5 // pred_check_branch
      %140 = sbr.rel (%p137) target = $region12
    $region11: #{decode_block_forward.2} parent=5 // pred_region
      %s141 = ssub.s32 %s10, 1
      // Predicated region
      $region13: #{decode_block_forward.2} parent=11 // pred_check
        %p142 = pneg %p71
      $region14: #{decode_block_forward.2} parent=11 // pred_check_branch
        %144 = sbr.rel (%p142) target = $region16
      $region15: #{decode_block_forward.2} parent=11 // pred_region
        _
      $region16: #{decode_block_forward.2} parent=11 // pred_fallthru
        _
    $region12: #{decode_block_forward.2} parent=5 // pred_fallthru
      _
    %p145 = scmp.lt.s32.totalorder %s10, 4
    // Predicated region
    $region17: #{decode_block_forward.2} parent=5 // pred_check
      %p146 = pneg %p145
    $region18: #{decode_block_forward.2} parent=5 // pred_check_branch
      %148 = sbr.rel (%p146) target = $region20
    $region19: #{decode_block_forward.2} parent=5 // pred_region
      // Predicated region
      $region21: #{decode_block_forward.2} parent=19 // pred_check
        %p149 = pneg %p44
      $region22: #{decode_block_forward.2} parent=19 // pred_check_branch
        %151 = sbr.rel (%p149) target = $region24
      $region23: #{decode_block_forward.2} parent=19 // pred_region
        %p152 = scmp.lt.s32.totalorder %s17, 1
        %s153 = scalar_select %p152, %s17, 1
        %p154 = scmp.lt.s32.totalorder %s18, 1
        %s155 = scalar_select %p154, %s18, 1
        %s156 = smul.addr %s155, 30
        %s157 = smul.addr %s153, 60
        %s158 = sadd.s32 %s156, %s157
        %s159 = smul.addr %s158, 8
        %s160 = scalar_lea.vmem %s0, %s159
      $region24: #{decode_block_forward.2} parent=19 // pred_fallthru
        _
    $region20: #{decode_block_forward.2} parent=5 // pred_fallthru
      _
    %p161 = scmp.le.s32.totalorder 1, %s10
    %p162 = scmp.lt.s32.totalorder %s10, 5
    %p163 = pnand %p161, %p162
    %p164 = pneg %p163
    // Predicated region
    $region25: #{decode_block_forward.2} parent=5 // pred_check
      _
    $region26: #{decode_block_forward.2} parent=5 // pred_check_branch
      %166 = sbr.rel (%p163) target = $region28
    $region27: #{decode_block_forward.2} parent=5 // pred_region
      %s167 = ssub.s32 %s10, 1
      %p168 = scmp.lt.s32.totalorder %s19, 1
      %s169 = scalar_select %p168, %s19, 1
      %p170 = scmp.lt.s32.totalorder %s20, 1
      %s171 = scalar_select %p170, %s20, 1
      %s172 = smul.addr %s171, 30
      %s173 = smul.addr %s169, 60
      %s174 = sadd.s32 %s172, %s173
      %s175 = smul.addr %s174, 8
      %s176 = scalar_lea.vmem %s0, %s175
      %p177 = pneg %p50
      %p178 = pneg %p47
      %p179 = pneg %p71
      %p180 = pneg %p68
      %p181 = pneg %p99
      %p182 = pneg %p96
      %p183 = scmp.lt.s32.totalorder %s19, 1
      %s184 = scalar_select %p183, %s19, 1
      %p185 = scmp.lt.s32.totalorder %s20, 1
      %s186 = scalar_select %p185, %s20, 1
      %s187 = smul.addr %s184, 2
      %s188 = sadd.s32 %s186, %s187
      %s189 = smul.addr %s188, 8
      %s190 = scalar_lea.vmem %s2, %s189
      %p191 = pneg %p127
      %p192 = pneg %p124
      %p193 = scmp.lt.s32.totalorder %s19, 1
      %s194 = scalar_select %p193, %s19, 1
      %p195 = scmp.lt.s32.totalorder %s20, 1
      %s196 = scalar_select %p195, %s20, 1
      %s197 = smul.addr %s194, 2
      %s198 = sadd.s32 %s196, %s197
      %s199 = smul.addr %s198, 2
      %s200 = scalar_lea.vmem %s3, %s199
      %p201 = scmp.lt.s32.totalorder %s19, 1
      %s202 = scalar_select %p201, %s19, 1
      %p203 = scmp.lt.s32.totalorder %s20, 1
      %s204 = scalar_select %p203, %s20, 1
      %s205 = smul.addr %s204, 30
      %s206 = smul.addr %s202, 60
      %s207 = sadd.s32 %s205, %s206
      %s208 = smul.addr %s207, 8
      %s209 = scalar_lea.vmem %s0, %s208
      %p210 = scmp.lt.s32.totalorder %s19, 1
      %s211 = scalar_select %p210, %s19, 1
      %p212 = scmp.lt.s32.totalorder %s20, 1
      %s213 = scalar_select %p212, %s20, 1
      %s214 = smul.addr %s211, 2
      %s215 = sadd.s32 %s213, %s214
      %s216 = smul.addr %s215, 8
      %s217 = scalar_lea.vmem %s2, %s216
      %p218 = scmp.lt.s32.totalorder %s19, 1
      %s219 = scalar_select %p218, %s19, 1
      %p220 = scmp.lt.s32.totalorder %s20, 1
      %s221 = scalar_select %p220, %s20, 1
      %s222 = smul.addr %s219, 2
      %s223 = sadd.s32 %s221, %s222
      %s224 = smul.addr %s223, 2
      %s225 = scalar_lea.vmem %s3, %s224
      %v226 = vld [vmem:[%s209] sm:$0xff]
      %v227 = vld [vmem:[%s209 + $0x8] sm:$0xff]
      %v228 = vld [vmem:[%s209 + $0x10] sm:$0x3]
      %v229 = vld [vmem:[%s209 + $0x18] sm:$0xff]
      %v230 = vld [vmem:[%s209 + $0x20] sm:$0xff]
      %v231 = vld [vmem:[%s209 + $0x28] sm:$0x3]
      %v232 = vld [vmem:[%s209 + $0x30] sm:$0xff]
      %v233 = vld [vmem:[%s209 + $0x38] sm:$0xff]
      %v234 = vld [vmem:[%s209 + $0x40] sm:$0x3]
      %v235 = vld [vmem:[%s209 + $0x48] sm:$0xff]
      %v236 = vld [vmem:[%s209 + $0x50] sm:$0xff]
      %v237 = vld [vmem:[%s209 + $0x58] sm:$0x3]
      %v238 = vld [vmem:[%s209 + $0x60] sm:$0xff]
      %v239 = vld [vmem:[%s209 + $0x68] sm:$0xff]
      %v240 = vld [vmem:[%s209 + $0x70] sm:$0x3]
      %v241 = vld [vmem:[%s209 + $0x78] sm:$0xff]
      %v242 = vld [vmem:[%s209 + $0x80] sm:$0xff]
      %v243 = vld [vmem:[%s209 + $0x88] sm:$0x3]
      %v244 = vld [vmem:[%s209 + $0x90] sm:$0xff]
      %v245 = vld [vmem:[%s209 + $0x98] sm:$0xff]
      %v246 = vld [vmem:[%s209 + $0xa0] sm:$0x3]
      %v247 = vld [vmem:[%s209 + $0xa8] sm:$0xff]
      %v248 = vld [vmem:[%s209 + $0xb0] sm:$0xff]
      %v249 = vld [vmem:[%s209 + $0xb8] sm:$0x3]
      %v250 = vld [vmem:[%s209 + $0xc0] sm:$0xff]
      %v251 = vld [vmem:[%s209 + $0xc8] sm:$0xff]
      %v252 = vld [vmem:[%s209 + $0xd0] sm:$0x3]
      %v253 = vld [vmem:[%s209 + $0xd8] sm:$0xff]
      %v254 = vld [vmem:[%s209 + $0xe0] sm:$0xff]
      %v255 = vld [vmem:[%s209 + $0xe8] sm:$0x3]
      %vm256 = vcmask 31744
      %257 = vst.msk [vmem:[#allocation2] sm:$0xff] %vm256, %v226
      %258 = vst.msk [vmem:[#allocation2 + $0x8] sm:$0xff] %vm256, %v227
      %259 = vst.msk [vmem:[#allocation2 + $0x10] sm:$0xff] %vm256, %v229
      %260 = vst.msk [vmem:[#allocation2 + $0x18] sm:$0xff] %vm256, %v230
      %261 = vst.msk [vmem:[#allocation2 + $0x20] sm:$0xff] %vm256, %v232
      %262 = vst.msk [vmem:[#allocation2 + $0x28] sm:$0xff] %vm256, %v233
      %263 = vst.msk [vmem:[#allocation2 + $0x30] sm:$0xff] %vm256, %v235
      %264 = vst.msk [vmem:[#allocation2 + $0x38] sm:$0xff] %vm256, %v236
      %265 = vst.msk [vmem:[#allocation2 + $0x40] sm:$0xff] %vm256, %v238
      %266 = vst.msk [vmem:[#allocation2 + $0x48] sm:$0xff] %vm256, %v239
      %267 = vst.msk [vmem:[#allocation2 + $0x50] sm:$0xff] %vm256, %v241
      %268 = vst.msk [vmem:[#allocation2 + $0x58] sm:$0xff] %vm256, %v242
      %269 = vst.msk [vmem:[#allocation2 + $0x60] sm:$0xff] %vm256, %v244
      %270 = vst.msk [vmem:[#allocation2 + $0x68] sm:$0xff] %vm256, %v245
      %271 = vst.msk [vmem:[#allocation2 + $0x70] sm:$0xff] %vm256, %v247
      %272 = vst.msk [vmem:[#allocation2 + $0x78] sm:$0xff] %vm256, %v248
      %vm297 = vcmask 1046528
      %v298 = vrot.slane %v226, 1
      %v299 = vrot.slane %v227, 1
      %v300 = vsel %vm297, %v298, %v299
      %v301 = vrot.slane %v228, 1
      %v302 = vsel %vm297, %v299, %v301
      %v303 = vrot.slane %v229, 1
      %v304 = vrot.slane %v230, 1
      %v305 = vsel %vm297, %v303, %v304
      %v306 = vrot.slane %v231, 1
      %v307 = vsel %vm297, %v304, %v306
      %v308 = vrot.slane %v232, 1
      %v309 = vrot.slane %v233, 1
      %v310 = vsel %vm297, %v308, %v309
      %v311 = vrot.slane %v234, 1
      %v312 = vsel %vm297, %v309, %v311
      %v313 = vrot.slane %v235, 1
      %v314 = vrot.slane %v236, 1
      %v315 = vsel %vm297, %v313, %v314
      %v316 = vrot.slane %v237, 1
      %v317 = vsel %vm297, %v314, %v316
      %v318 = vrot.slane %v238, 1
      %v319 = vrot.slane %v239, 1
      %v320 = vsel %vm297, %v318, %v319
      %v321 = vrot.slane %v240, 1
      %v322 = vsel %vm297, %v319, %v321
      %v323 = vrot.slane %v241, 1
      %v324 = vrot.slane %v242, 1
      %v325 = vsel %vm297, %v323, %v324
      %v326 = vrot.slane %v243, 1
      %v327 = vsel %vm297, %v324, %v326
      %v328 = vrot.slane %v244, 1
      %v329 = vrot.slane %v245, 1
      %v330 = vsel %vm297, %v328, %v329
      %v331 = vrot.slane %v246, 1
      %v332 = vsel %vm297, %v329, %v331
      %v333 = vrot.slane %v247, 1
      %v334 = vrot.slane %v248, 1
      %v335 = vsel %vm297, %v333, %v334
      %v336 = vrot.slane %v249, 1
      %v337 = vsel %vm297, %v334, %v336
      %338 = vrot.lane.b32.xlu0 %v300, 4
      %v339 = vpop.permute.xlu0 %338
      %340 = vrot.lane.b32.xlu0 %v302, 4
      %v341 = vpop.permute.xlu0 %340
      %342 = vrot.lane.b32.xlu0 %v305, 4
      %v343 = vpop.permute.xlu0 %342
      %344 = vrot.lane.b32.xlu0 %v307, 4
      %v345 = vpop.permute.xlu0 %344
      %346 = vrot.lane.b32.xlu0 %v310, 4
      %v347 = vpop.permute.xlu0 %346
      %348 = vrot.lane.b32.xlu0 %v312, 4
      %v349 = vpop.permute.xlu0 %348
      %350 = vrot.lane.b32.xlu0 %v315, 4
      %v351 = vpop.permute.xlu0 %350
      %352 = vrot.lane.b32.xlu0 %v317, 4
      %v353 = vpop.permute.xlu0 %352
      %354 = vrot.lane.b32.xlu0 %v320, 4
      %v355 = vpop.permute.xlu0 %354
      %356 = vrot.lane.b32.xlu0 %v322, 4
      %v357 = vpop.permute.xlu0 %356
      %358 = vrot.lane.b32.xlu0 %v325, 4
      %v359 = vpop.permute.xlu0 %358
      %360 = vrot.lane.b32.xlu0 %v327, 4
      %v361 = vpop.permute.xlu0 %360
      %362 = vrot.lane.b32.xlu0 %v330, 4
      %v363 = vpop.permute.xlu0 %362
      %364 = vrot.lane.b32.xlu0 %v332, 4
      %v365 = vpop.permute.xlu0 %364
      %366 = vrot.lane.b32.xlu0 %v335, 4
      %v367 = vpop.permute.xlu0 %366
      %368 = vrot.lane.b32.xlu0 %v337, 4
      %v369 = vpop.permute.xlu0 %368
      %vm386 = vcmask 64544
      %387 = vst.msk [vmem:[#allocation2] sm:$0xff] %vm386, %v339
      %388 = vst.msk [vmem:[#allocation2 + $0x8] sm:$0xff] %vm386, %v341
      %389 = vst.msk [vmem:[#allocation2 + $0x10] sm:$0xff] %vm386, %v343
      %390 = vst.msk [vmem:[#allocation2 + $0x18] sm:$0xff] %vm386, %v345
      %391 = vst.msk [vmem:[#allocation2 + $0x20] sm:$0xff] %vm386, %v347
      %392 = vst.msk [vmem:[#allocation2 + $0x28] sm:$0xff] %vm386, %v349
      %393 = vst.msk [vmem:[#allocation2 + $0x30] sm:$0xff] %vm386, %v351
      %394 = vst.msk [vmem:[#allocation2 + $0x38] sm:$0xff] %vm386, %v353
      %395 = vst.msk [vmem:[#allocation2 + $0x40] sm:$0xff] %vm386, %v355
      %396 = vst.msk [vmem:[#allocation2 + $0x48] sm:$0xff] %vm386, %v357
      %397 = vst.msk [vmem:[#allocation2 + $0x50] sm:$0xff] %vm386, %v359
      %398 = vst.msk [vmem:[#allocation2 + $0x58] sm:$0xff] %vm386, %v361
      %399 = vst.msk [vmem:[#allocation2 + $0x60] sm:$0xff] %vm386, %v363
      %400 = vst.msk [vmem:[#allocation2 + $0x68] sm:$0xff] %vm386, %v365
      %401 = vst.msk [vmem:[#allocation2 + $0x70] sm:$0xff] %vm386, %v367
      %402 = vst.msk [vmem:[#allocation2 + $0x78] sm:$0xff] %vm386, %v369
      %vm403 = vcmask 1045504
      %v404 = vrot.slane %v226, 2
      %v405 = vrot.slane %v227, 2
      %v406 = vsel %vm403, %v404, %v405
      %v407 = vrot.slane %v228, 2
      %v408 = vsel %vm403, %v405, %v407
      %v409 = vrot.slane %v229, 2
      %v410 = vrot.slane %v230, 2
      %v411 = vsel %vm403, %v409, %v410
      %v412 = vrot.slane %v231, 2
      %v413 = vsel %vm403, %v410, %v412
      %v414 = vrot.slane %v232, 2
      %v415 = vrot.slane %v233, 2
      %v416 = vsel %vm403, %v414, %v415
      %v417 = vrot.slane %v234, 2
      %v418 = vsel %vm403, %v415, %v417
      %v419 = vrot.slane %v235, 2
      %v420 = vrot.slane %v236, 2
      %v421 = vsel %vm403, %v419, %v420
      %v422 = vrot.slane %v237, 2
      %v423 = vsel %vm403, %v420, %v422
      %v424 = vrot.slane %v238, 2
      %v425 = vrot.slane %v239, 2
      %v426 = vsel %vm403, %v424, %v425
      %v427 = vrot.slane %v240, 2
      %v428 = vsel %vm403, %v425, %v427
      %v429 = vrot.slane %v241, 2
      %v430 = vrot.slane %v242, 2
      %v431 = vsel %vm403, %v429, %v430
      %v432 = vrot.slane %v243, 2
      %v433 = vsel %vm403, %v430, %v432
      %v434 = vrot.slane %v244, 2
      %v435 = vrot.slane %v245, 2
      %v436 = vsel %vm403, %v434, %v435
      %v437 = vrot.slane %v246, 2
      %v438 = vsel %vm403, %v435, %v437
      %v439 = vrot.slane %v247, 2
      %v440 = vrot.slane %v248, 2
      %v441 = vsel %vm403, %v439, %v440
      %v442 = vrot.slane %v249, 2
      %v443 = vsel %vm403, %v440, %v442
      %444 = vrot.lane.b32.xlu0 %v406, 8
      %v445 = vpop.permute.xlu0 %444
      %446 = vrot.lane.b32.xlu0 %v408, 8
      %v447 = vpop.permute.xlu0 %446
      %448 = vrot.lane.b32.xlu0 %v411, 8
      %v449 = vpop.permute.xlu0 %448
      %450 = vrot.lane.b32.xlu0 %v413, 8
      %v451 = vpop.permute.xlu0 %450
      %452 = vrot.lane.b32.xlu0 %v416, 8
      %v453 = vpop.permute.xlu0 %452
      %454 = vrot.lane.b32.xlu0 %v418, 8
      %v455 = vpop.permute.xlu0 %454
      %456 = vrot.lane.b32.xlu0 %v421, 8
      %v457 = vpop.permute.xlu0 %456
      %458 = vrot.lane.b32.xlu0 %v423, 8
      %v459 = vpop.permute.xlu0 %458
      %460 = vrot.lane.b32.xlu0 %v426, 8
      %v461 = vpop.permute.xlu0 %460
      %462 = vrot.lane.b32.xlu0 %v428, 8
      %v463 = vpop.permute.xlu0 %462
      %464 = vrot.lane.b32.xlu0 %v431, 8
      %v465 = vpop.permute.xlu0 %464
      %466 = vrot.lane.b32.xlu0 %v433, 8
      %v467 = vpop.permute.xlu0 %466
      %468 = vrot.lane.b32.xlu0 %v436, 8
      %v469 = vpop.permute.xlu0 %468
      %470 = vrot.lane.b32.xlu0 %v438, 8
      %v471 = vpop.permute.xlu0 %470
      %472 = vrot.lane.b32.xlu0 %v441, 8
      %v473 = vpop.permute.xlu0 %472
      %474 = vrot.lane.b32.xlu0 %v443, 8
      %v475 = vpop.permute.xlu0 %474
      %vm492 = vcmask 97344
      %493 = vst.msk [vmem:[#allocation2] sm:$0xff] %vm492, %v445
      %494 = vst.msk [vmem:[#allocation2 + $0x8] sm:$0xff] %vm492, %v447
      %495 = vst.msk [vmem:[#allocation2 + $0x10] sm:$0xff] %vm492, %v449
      %496 = vst.msk [vmem:[#allocation2 + $0x18] sm:$0xff] %vm492, %v451
      %497 = vst.msk [vmem:[#allocation2 + $0x20] sm:$0xff] %vm492, %v453
      %498 = vst.msk [vmem:[#allocation2 + $0x28] sm:$0xff] %vm492, %v455
      %499 = vst.msk [vmem:[#allocation2 + $0x30] sm:$0xff] %vm492, %v457
      %500 = vst.msk [vmem:[#allocation2 + $0x38] sm:$0xff] %vm492, %v459
      %501 = vst.msk [vmem:[#allocation2 + $0x40] sm:$0xff] %vm492, %v461
      %502 = vst.msk [vmem:[#allocation2 + $0x48] sm:$0xff] %vm492, %v463
      %503 = vst.msk [vmem:[#allocation2 + $0x50] sm:$0xff] %vm492, %v465
      %504 = vst.msk [vmem:[#allocation2 + $0x58] sm:$0xff] %vm492, %v467
      %505 = vst.msk [vmem:[#allocation2 + $0x60] sm:$0xff] %vm492, %v469
      %506 = vst.msk [vmem:[#allocation2 + $0x68] sm:$0xff] %vm492, %v471
      %507 = vst.msk [vmem:[#allocation2 + $0x70] sm:$0xff] %vm492, %v473
      %508 = vst.msk [vmem:[#allocation2 + $0x78] sm:$0xff] %vm492, %v475
      %511 = vrot.lane.b32.xlu0 %v229, 12
      %v512 = vpop.permute.xlu0 %511
      %513 = vrot.lane.b32.xlu0 %v230, 12
      %v514 = vpop.permute.xlu0 %513
      %515 = vrot.lane.b32.xlu0 %v232, 12
      %v516 = vpop.permute.xlu0 %515
      %517 = vrot.lane.b32.xlu0 %v233, 12
      %v518 = vpop.permute.xlu0 %517
      %519 = vrot.lane.b32.xlu0 %v235, 12
      %v520 = vpop.permute.xlu0 %519
      %521 = vrot.lane.b32.xlu0 %v236, 12
      %v522 = vpop.permute.xlu0 %521
      %523 = vrot.lane.b32.xlu0 %v238, 12
      %v524 = vpop.permute.xlu0 %523
      %525 = vrot.lane.b32.xlu0 %v239, 12
      %v526 = vpop.permute.xlu0 %525
      %527 = vrot.lane.b32.xlu0 %v241, 12
      %v528 = vpop.permute.xlu0 %527
      %529 = vrot.lane.b32.xlu0 %v242, 12
      %v530 = vpop.permute.xlu0 %529
      %531 = vrot.lane.b32.xlu0 %v244, 12
      %v532 = vpop.permute.xlu0 %531
      %533 = vrot.lane.b32.xlu0 %v245, 12
      %v534 = vpop.permute.xlu0 %533
      %535 = vrot.lane.b32.xlu0 %v247, 12
      %v536 = vpop.permute.xlu0 %535
      %537 = vrot.lane.b32.xlu0 %v248, 12
      %v538 = vpop.permute.xlu0 %537
      %539 = vrot.lane.b32.xlu0 %v250, 12
      %v540 = vpop.permute.xlu0 %539
      %541 = vrot.lane.b32.xlu0 %v251, 12
      %v542 = vpop.permute.xlu0 %541
      %vm559 = vcmask 130144
      %560 = vst.msk [vmem:[#allocation2] sm:$0xff] %vm559, %v512
      %561 = vst.msk [vmem:[#allocation2 + $0x8] sm:$0xff] %vm559, %v514
      %562 = vst.msk [vmem:[#allocation2 + $0x10] sm:$0xff] %vm559, %v516
      %563 = vst.msk [vmem:[#allocation2 + $0x18] sm:$0xff] %vm559, %v518
      %564 = vst.msk [vmem:[#allocation2 + $0x20] sm:$0xff] %vm559, %v520
      %565 = vst.msk [vmem:[#allocation2 + $0x28] sm:$0xff] %vm559, %v522
      %566 = vst.msk [vmem:[#allocation2 + $0x30] sm:$0xff] %vm559, %v524
      %567 = vst.msk [vmem:[#allocation2 + $0x38] sm:$0xff] %vm559, %v526
      %568 = vst.msk [vmem:[#allocation2 + $0x40] sm:$0xff] %vm559, %v528
      %569 = vst.msk [vmem:[#allocation2 + $0x48] sm:$0xff] %vm559, %v530
      %570 = vst.msk [vmem:[#allocation2 + $0x50] sm:$0xff] %vm559, %v532
      %571 = vst.msk [vmem:[#allocation2 + $0x58] sm:$0xff] %vm559, %v534
      %572 = vst.msk [vmem:[#allocation2 + $0x60] sm:$0xff] %vm559, %v536
      %573 = vst.msk [vmem:[#allocation2 + $0x68] sm:$0xff] %vm559, %v538
      %574 = vst.msk [vmem:[#allocation2 + $0x70] sm:$0xff] %vm559, %v540
      %575 = vst.msk [vmem:[#allocation2 + $0x78] sm:$0xff] %vm559, %v542
      %v577 = vrot.slane %v250, 1
      %v578 = vrot.slane %v251, 1
      %v579 = vsel %vm297, %v577, %v578
      %v580 = vrot.slane %v252, 1
      %v581 = vsel %vm297, %v578, %v580
      %582 = vrot.lane.b32.xlu0 %v305, 16
      %v583 = vpop.permute.xlu0 %582
      %584 = vrot.lane.b32.xlu0 %v307, 16
      %v585 = vpop.permute.xlu0 %584
      %586 = vrot.lane.b32.xlu0 %v310, 16
      %v587 = vpop.permute.xlu0 %586
      %588 = vrot.lane.b32.xlu0 %v312, 16
      %v589 = vpop.permute.xlu0 %588
      %590 = vrot.lane.b32.xlu0 %v315, 16
      %v591 = vpop.permute.xlu0 %590
      %592 = vrot.lane.b32.xlu0 %v317, 16
      %v593 = vpop.permute.xlu0 %592
      %594 = vrot.lane.b32.xlu0 %v320, 16
      %v595 = vpop.permute.xlu0 %594
      %596 = vrot.lane.b32.xlu0 %v322, 16
      %v597 = vpop.permute.xlu0 %596
      %598 = vrot.lane.b32.xlu0 %v325, 16
      %v599 = vpop.permute.xlu0 %598
      %600 = vrot.lane.b32.xlu0 %v327, 16
      %v601 = vpop.permute.xlu0 %600
      %602 = vrot.lane.b32.xlu0 %v330, 16
      %v603 = vpop.permute.xlu0 %602
      %604 = vrot.lane.b32.xlu0 %v332, 16
      %v605 = vpop.permute.xlu0 %604
      %606 = vrot.lane.b32.xlu0 %v335, 16
      %v607 = vpop.permute.xlu0 %606
      %608 = vrot.lane.b32.xlu0 %v337, 16
      %v609 = vpop.permute.xlu0 %608
      %610 = vrot.lane.b32.xlu0 %v579, 16
      %v611 = vpop.permute.xlu0 %610
      %612 = vrot.lane.b32.xlu0 %v581, 16
      %v613 = vpop.permute.xlu0 %612
      %vm630 = vcmask 162944
      %631 = vst.msk [vmem:[#allocation2] sm:$0xff] %vm630, %v583
      %632 = vst.msk [vmem:[#allocation2 + $0x8] sm:$0xff] %vm630, %v585
      %633 = vst.msk [vmem:[#allocation2 + $0x10] sm:$0xff] %vm630, %v587
      %634 = vst.msk [vmem:[#allocation2 + $0x18] sm:$0xff] %vm630, %v589
      %635 = vst.msk [vmem:[#allocation2 + $0x20] sm:$0xff] %vm630, %v591
      %636 = vst.msk [vmem:[#allocation2 + $0x28] sm:$0xff] %vm630, %v593
      %637 = vst.msk [vmem:[#allocation2 + $0x30] sm:$0xff] %vm630, %v595
      %638 = vst.msk [vmem:[#allocation2 + $0x38] sm:$0xff] %vm630, %v597
      %639 = vst.msk [vmem:[#allocation2 + $0x40] sm:$0xff] %vm630, %v599
      %640 = vst.msk [vmem:[#allocation2 + $0x48] sm:$0xff] %vm630, %v601
      %641 = vst.msk [vmem:[#allocation2 + $0x50] sm:$0xff] %vm630, %v603
      %642 = vst.msk [vmem:[#allocation2 + $0x58] sm:$0xff] %vm630, %v605
      %643 = vst.msk [vmem:[#allocation2 + $0x60] sm:$0xff] %vm630, %v607
      %644 = vst.msk [vmem:[#allocation2 + $0x68] sm:$0xff] %vm630, %v609
      %645 = vst.msk [vmem:[#allocation2 + $0x70] sm:$0xff] %vm630, %v611
      %646 = vst.msk [vmem:[#allocation2 + $0x78] sm:$0xff] %vm630, %v613
      %v647 = vrot.slane %v250, 2
      %v648 = vrot.slane %v251, 2
      %v649 = vsel %vm403, %v647, %v648
      %v650 = vrot.slane %v252, 2
      %v651 = vsel %vm403, %v648, %v650
      %652 = vrot.lane.b32.xlu0 %v411, 20
      %v653 = vpop.permute.xlu0 %652
      %654 = vrot.lane.b32.xlu0 %v413, 20
      %v655 = vpop.permute.xlu0 %654
      %656 = vrot.lane.b32.xlu0 %v416, 20
      %v657 = vpop.permute.xlu0 %656
      %658 = vrot.lane.b32.xlu0 %v418, 20
      %v659 = vpop.permute.xlu0 %658
      %660 = vrot.lane.b32.xlu0 %v421, 20
      %v661 = vpop.permute.xlu0 %660
      %662 = vrot.lane.b32.xlu0 %v423, 20
      %v663 = vpop.permute.xlu0 %662
      %664 = vrot.lane.b32.xlu0 %v426, 20
      %v665 = vpop.permute.xlu0 %664
      %666 = vrot.lane.b32.xlu0 %v428, 20
      %v667 = vpop.permute.xlu0 %666
      %668 = vrot.lane.b32.xlu0 %v431, 20
      %v669 = vpop.permute.xlu0 %668
      %670 = vrot.lane.b32.xlu0 %v433, 20
      %v671 = vpop.permute.xlu0 %670
      %672 = vrot.lane.b32.xlu0 %v436, 20
      %v673 = vpop.permute.xlu0 %672
      %674 = vrot.lane.b32.xlu0 %v438, 20
      %v675 = vpop.permute.xlu0 %674
      %676 = vrot.lane.b32.xlu0 %v441, 20
      %v677 = vpop.permute.xlu0 %676
      %678 = vrot.lane.b32.xlu0 %v443, 20
      %v679 = vpop.permute.xlu0 %678
      %680 = vrot.lane.b32.xlu0 %v649, 20
      %v681 = vpop.permute.xlu0 %680
      %682 = vrot.lane.b32.xlu0 %v651, 20
      %v683 = vpop.permute.xlu0 %682
      %vm700 = vcmask 195744
      %701 = vst.msk [vmem:[#allocation2] sm:$0xff] %vm700, %v653
      %702 = vst.msk [vmem:[#allocation2 + $0x8] sm:$0xff] %vm700, %v655
      %703 = vst.msk [vmem:[#allocation2 + $0x10] sm:$0xff] %vm700, %v657
      %704 = vst.msk [vmem:[#allocation2 + $0x18] sm:$0xff] %vm700, %v659
      %705 = vst.msk [vmem:[#allocation2 + $0x20] sm:$0xff] %vm700, %v661
      %706 = vst.msk [vmem:[#allocation2 + $0x28] sm:$0xff] %vm700, %v663
      %707 = vst.msk [vmem:[#allocation2 + $0x30] sm:$0xff] %vm700, %v665
      %708 = vst.msk [vmem:[#allocation2 + $0x38] sm:$0xff] %vm700, %v667
      %709 = vst.msk [vmem:[#allocation2 + $0x40] sm:$0xff] %vm700, %v669
      %710 = vst.msk [vmem:[#allocation2 + $0x48] sm:$0xff] %vm700, %v671
      %711 = vst.msk [vmem:[#allocation2 + $0x50] sm:$0xff] %vm700, %v673
      %712 = vst.msk [vmem:[#allocation2 + $0x58] sm:$0xff] %vm700, %v675
      %713 = vst.msk [vmem:[#allocation2 + $0x60] sm:$0xff] %vm700, %v677
      %714 = vst.msk [vmem:[#allocation2 + $0x68] sm:$0xff] %vm700, %v679
      %715 = vst.msk [vmem:[#allocation2 + $0x70] sm:$0xff] %vm700, %v681
      %716 = vst.msk [vmem:[#allocation2 + $0x78] sm:$0xff] %vm700, %v683
      %719 = vrot.lane.b32.xlu0 %v232, 24
      %v720 = vpop.permute.xlu0 %719
      %721 = vrot.lane.b32.xlu0 %v233, 24
      %v722 = vpop.permute.xlu0 %721
      %723 = vrot.lane.b32.xlu0 %v235, 24
      %v724 = vpop.permute.xlu0 %723
      %725 = vrot.lane.b32.xlu0 %v236, 24
      %v726 = vpop.permute.xlu0 %725
      %727 = vrot.lane.b32.xlu0 %v238, 24
      %v728 = vpop.permute.xlu0 %727
      %729 = vrot.lane.b32.xlu0 %v239, 24
      %v730 = vpop.permute.xlu0 %729
      %731 = vrot.lane.b32.xlu0 %v241, 24
      %v732 = vpop.permute.xlu0 %731
      %733 = vrot.lane.b32.xlu0 %v242, 24
      %v734 = vpop.permute.xlu0 %733
      %735 = vrot.lane.b32.xlu0 %v244, 24
      %v736 = vpop.permute.xlu0 %735
      %737 = vrot.lane.b32.xlu0 %v245, 24
      %v738 = vpop.permute.xlu0 %737
      %739 = vrot.lane.b32.xlu0 %v247, 24
      %v740 = vpop.permute.xlu0 %739
      %741 = vrot.lane.b32.xlu0 %v248, 24
      %v742 = vpop.permute.xlu0 %741
      %743 = vrot.lane.b32.xlu0 %v250, 24
      %v744 = vpop.permute.xlu0 %743
      %745 = vrot.lane.b32.xlu0 %v251, 24
      %v746 = vpop.permute.xlu0 %745
      %747 = vrot.lane.b32.xlu0 %v253, 24
      %v748 = vpop.permute.xlu0 %747
      %749 = vrot.lane.b32.xlu0 %v254, 24
      %v750 = vpop.permute.xlu0 %749
      %vm767 = vcmask 228544
      %768 = vst.msk [vmem:[#allocation2] sm:$0xff] %vm767, %v720
      %769 = vst.msk [vmem:[#allocation2 + $0x8] sm:$0xff] %vm767, %v722
      %770 = vst.msk [vmem:[#allocation2 + $0x10] sm:$0xff] %vm767, %v724
      %771 = vst.msk [vmem:[#allocation2 + $0x18] sm:$0xff] %vm767, %v726
      %772 = vst.msk [vmem:[#allocation2 + $0x20] sm:$0xff] %vm767, %v728
      %773 = vst.msk [vmem:[#allocation2 + $0x28] sm:$0xff] %vm767, %v730
      %774 = vst.msk [vmem:[#allocation2 + $0x30] sm:$0xff] %vm767, %v732
      %775 = vst.msk [vmem:[#allocation2 + $0x38] sm:$0xff] %vm767, %v734
      %776 = vst.msk [vmem:[#allocation2 + $0x40] sm:$0xff] %vm767, %v736
      %777 = vst.msk [vmem:[#allocation2 + $0x48] sm:$0xff] %vm767, %v738
      %778 = vst.msk [vmem:[#allocation2 + $0x50] sm:$0xff] %vm767, %v740
      %779 = vst.msk [vmem:[#allocation2 + $0x58] sm:$0xff] %vm767, %v742
      %780 = vst.msk [vmem:[#allocation2 + $0x60] sm:$0xff] %vm767, %v744
      %781 = vst.msk [vmem:[#allocation2 + $0x68] sm:$0xff] %vm767, %v746
      %782 = vst.msk [vmem:[#allocation2 + $0x70] sm:$0xff] %vm767, %v748
      %783 = vst.msk [vmem:[#allocation2 + $0x78] sm:$0xff] %vm767, %v750
      %v785 = vrot.slane %v253, 1
      %v786 = vrot.slane %v254, 1
      %v787 = vsel %vm297, %v785, %v786
      %v788 = vrot.slane %v255, 1
      %v789 = vsel %vm297, %v786, %v788
      %790 = vrot.lane.b32.xlu0 %v310, 28
      %v791 = vpop.permute.xlu0 %790
      %792 = vrot.lane.b32.xlu0 %v312, 28
      %v793 = vpop.permute.xlu0 %792
      %794 = vrot.lane.b32.xlu0 %v315, 28
      %v795 = vpop.permute.xlu0 %794
      %796 = vrot.lane.b32.xlu0 %v317, 28
      %v797 = vpop.permute.xlu0 %796
      %798 = vrot.lane.b32.xlu0 %v320, 28
      %v799 = vpop.permute.xlu0 %798
      %800 = vrot.lane.b32.xlu0 %v322, 28
      %v801 = vpop.permute.xlu0 %800
      %802 = vrot.lane.b32.xlu0 %v325, 28
      %v803 = vpop.permute.xlu0 %802
      %804 = vrot.lane.b32.xlu0 %v327, 28
      %v805 = vpop.permute.xlu0 %804
      %806 = vrot.lane.b32.xlu0 %v330, 28
      %v807 = vpop.permute.xlu0 %806
      %808 = vrot.lane.b32.xlu0 %v332, 28
      %v809 = vpop.permute.xlu0 %808
      %810 = vrot.lane.b32.xlu0 %v335, 28
      %v811 = vpop.permute.xlu0 %810
      %812 = vrot.lane.b32.xlu0 %v337, 28
      %v813 = vpop.permute.xlu0 %812
      %814 = vrot.lane.b32.xlu0 %v579, 28
      %v815 = vpop.permute.xlu0 %814
      %816 = vrot.lane.b32.xlu0 %v581, 28
      %v817 = vpop.permute.xlu0 %816
      %818 = vrot.lane.b32.xlu0 %v787, 28
      %v819 = vpop.permute.xlu0 %818
      %820 = vrot.lane.b32.xlu0 %v789, 28
      %v821 = vpop.permute.xlu0 %820
      %vm838 = vcmask 261344
      %839 = vst.msk [vmem:[#allocation2] sm:$0xff] %vm838, %v791
      %840 = vst.msk [vmem:[#allocation2 + $0x8] sm:$0xff] %vm838, %v793
      %841 = vst.msk [vmem:[#allocation2 + $0x10] sm:$0xff] %vm838, %v795
      %842 = vst.msk [vmem:[#allocation2 + $0x18] sm:$0xff] %vm838, %v797
      %843 = vst.msk [vmem:[#allocation2 + $0x20] sm:$0xff] %vm838, %v799
      %844 = vst.msk [vmem:[#allocation2 + $0x28] sm:$0xff] %vm838, %v801
      %845 = vst.msk [vmem:[#allocation2 + $0x30] sm:$0xff] %vm838, %v803
      %846 = vst.msk [vmem:[#allocation2 + $0x38] sm:$0xff] %vm838, %v805
      %847 = vst.msk [vmem:[#allocation2 + $0x40] sm:$0xff] %vm838, %v807
      %848 = vst.msk [vmem:[#allocation2 + $0x48] sm:$0xff] %vm838, %v809
      %849 = vst.msk [vmem:[#allocation2 + $0x50] sm:$0xff] %vm838, %v811
      %850 = vst.msk [vmem:[#allocation2 + $0x58] sm:$0xff] %vm838, %v813
      %851 = vst.msk [vmem:[#allocation2 + $0x60] sm:$0xff] %vm838, %v815
      %852 = vst.msk [vmem:[#allocation2 + $0x68] sm:$0xff] %vm838, %v817
      %853 = vst.msk [vmem:[#allocation2 + $0x70] sm:$0xff] %vm838, %v819
      %854 = vst.msk [vmem:[#allocation2 + $0x78] sm:$0xff] %vm838, %v821
      %v855 = vrot.slane %v253, 2
      %v856 = vrot.slane %v254, 2
      %v857 = vsel %vm403, %v855, %v856
      %v858 = vrot.slane %v255, 2
      %v859 = vsel %vm403, %v856, %v858
      %860 = vrot.lane.b32.xlu0 %v416, 32
      %v861 = vpop.permute.xlu0 %860
      %862 = vrot.lane.b32.xlu0 %v418, 32
      %v863 = vpop.permute.xlu0 %862
      %864 = vrot.lane.b32.xlu0 %v421, 32
      %v865 = vpop.permute.xlu0 %864
      %866 = vrot.lane.b32.xlu0 %v423, 32
      %v867 = vpop.permute.xlu0 %866
      %868 = vrot.lane.b32.xlu0 %v426, 32
      %v869 = vpop.permute.xlu0 %868
      %870 = vrot.lane.b32.xlu0 %v428, 32
      %v871 = vpop.permute.xlu0 %870
      %872 = vrot.lane.b32.xlu0 %v431, 32
      %v873 = vpop.permute.xlu0 %872
      %874 = vrot.lane.b32.xlu0 %v433, 32
      %v875 = vpop.permute.xlu0 %874
      %876 = vrot.lane.b32.xlu0 %v436, 32
      %v877 = vpop.permute.xlu0 %876
      %878 = vrot.lane.b32.xlu0 %v438, 32
      %v879 = vpop.permute.xlu0 %878
      %880 = vrot.lane.b32.xlu0 %v441, 32
      %v881 = vpop.permute.xlu0 %880
      %882 = vrot.lane.b32.xlu0 %v443, 32
      %v883 = vpop.permute.xlu0 %882
      %884 = vrot.lane.b32.xlu0 %v649, 32
      %v885 = vpop.permute.xlu0 %884
      %886 = vrot.lane.b32.xlu0 %v651, 32
      %v887 = vpop.permute.xlu0 %886
      %888 = vrot.lane.b32.xlu0 %v857, 32
      %v889 = vpop.permute.xlu0 %888
      %890 = vrot.lane.b32.xlu0 %v859, 32
      %v891 = vpop.permute.xlu0 %890
      %vm908 = vcmask 294144
      %909 = vst.msk [vmem:[#allocation2] sm:$0xff] %vm908, %v861
      %910 = vst.msk [vmem:[#allocation2 + $0x8] sm:$0xff] %vm908, %v863
      %911 = vst.msk [vmem:[#allocation2 + $0x10] sm:$0xff] %vm908, %v865
      %912 = vst.msk [vmem:[#allocation2 + $0x18] sm:$0xff] %vm908, %v867
      %913 = vst.msk [vmem:[#allocation2 + $0x20] sm:$0xff] %vm908, %v869
      %914 = vst.msk [vmem:[#allocation2 + $0x28] sm:$0xff] %vm908, %v871
      %915 = vst.msk [vmem:[#allocation2 + $0x30] sm:$0xff] %vm908, %v873
      %916 = vst.msk [vmem:[#allocation2 + $0x38] sm:$0xff] %vm908, %v875
      %917 = vst.msk [vmem:[#allocation2 + $0x40] sm:$0xff] %vm908, %v877
      %918 = vst.msk [vmem:[#allocation2 + $0x48] sm:$0xff] %vm908, %v879
      %919 = vst.msk [vmem:[#allocation2 + $0x50] sm:$0xff] %vm908, %v881
      %920 = vst.msk [vmem:[#allocation2 + $0x58] sm:$0xff] %vm908, %v883
      %921 = vst.msk [vmem:[#allocation2 + $0x60] sm:$0xff] %vm908, %v885
      %922 = vst.msk [vmem:[#allocation2 + $0x68] sm:$0xff] %vm908, %v887
      %923 = vst.msk [vmem:[#allocation2 + $0x70] sm:$0xff] %vm908, %v889
      %924 = vst.msk [vmem:[#allocation2 + $0x78] sm:$0xff] %vm908, %v891
      %v925 = vld [vmem:[#allocation2] sm:$0xff]
      %v926 = vld [vmem:[#allocation2 + $0x8] sm:$0xff]
      %v927 = vld [vmem:[#allocation2 + $0x10] sm:$0xff]
      %v928 = vld [vmem:[#allocation2 + $0x18] sm:$0xff]
      %v929 = vld [vmem:[#allocation2 + $0x20] sm:$0xff]
      %v930 = vld [vmem:[#allocation2 + $0x28] sm:$0xff]
      %v931 = vld [vmem:[#allocation2 + $0x30] sm:$0xff]
      %v932 = vld [vmem:[#allocation2 + $0x38] sm:$0xff]
      %v933 = vld [vmem:[#allocation2 + $0x40] sm:$0xff]
      %v934 = vld [vmem:[#allocation2 + $0x48] sm:$0xff]
      %v935 = vld [vmem:[#allocation2 + $0x50] sm:$0xff]
      %v936 = vld [vmem:[#allocation2 + $0x58] sm:$0xff]
      %v937 = vld [vmem:[#allocation2 + $0x60] sm:$0xff]
      %v938 = vld [vmem:[#allocation2 + $0x68] sm:$0xff]
      %v939 = vld [vmem:[#allocation2 + $0x70] sm:$0xff]
      %v940 = vld [vmem:[#allocation2 + $0x78] sm:$0xff]
      %v941 = vld [vmem:[%s1] sm:$0xff]
      %v942 = vld [vmem:[%s1 + $0x8] sm:$0xff]
      %v943 = vld [vmem:[%s1 + $0x10] sm:$0xff]
      %v944 = vld [vmem:[%s1 + $0x18] sm:$0xff]
      %v945 = vld [vmem:[%s1 + $0x20] sm:$0xf]
      %vm946 = vcmask 293888
      %v948 = vsel %vm946, %v925, 0
      %v951 = vsel %vm946, %v926, 0
      %v954 = vsel %vm946, %v927, 0
      %v957 = vsel %vm946, %v928, 0
      %v960 = vsel %vm946, %v929, 0
      %v963 = vsel %vm946, %v930, 0
      %v966 = vsel %vm946, %v931, 0
      %v969 = vsel %vm946, %v932, 0
      %v972 = vsel %vm946, %v933, 0
      %v975 = vsel %vm946, %v934, 0
      %v978 = vsel %vm946, %v935, 0
      %v981 = vsel %vm946, %v936, 0
      %v984 = vsel %vm946, %v937, 0
      %v987 = vsel %vm946, %v938, 0
      %v990 = vsel %vm946, %v939, 0
      %v993 = vsel %vm946, %v940, 0
      %vm995 = vcmask 1043456
      %v997 = vsel %vm995, %v945, 0
      %999 = vmatpush.msra.mxu0 0.0
      %1000 = vmatpush.msra.mxu0 0.0
      %1001 = vmatpush.msra.mxu0 0.0
      %1002 = vmatpush.msra.mxu0 0.0
      %1003 = vmatpush.msra.mxu0 0.0
      %1004 = vmatpush.msra.mxu0 0.0
      %1005 = vmatpush.msra.mxu0 0.0
      %1006 = vmatpush.msra.mxu0 0.0
      %1007 = vmatpush.msra.mxu0 0.0
      %1008 = vmatpush.msra.mxu0 0.0
      %1009 = vmatpush.msra.mxu0 0.0
      %1010 = vmatpush.msra.mxu0 %v997
      %1011 = vmatpush.msra.mxu0 %v944
      %1012 = vmatpush.msra.mxu0 %v943
      %1013 = vmatpush.msra.mxu0 %v942
      %1014 = vmatpush.msra.mxu0 %v941
      %1015 = vmatmul.f32.gmra.mxu0 %v948
      %v1016 = vpop.f32.mrf.mxu0
      %v1017 = vadd.f32 0.0, %v1016
      %1018 = vmatmul.f32.gmra.mxu0 %v951
      %v1019 = vpop.f32.mrf.mxu0
      %v1020 = vadd.f32 0.0, %v1019
      %1021 = vmatmul.f32.gmra.mxu0 %v954
      %v1022 = vpop.f32.mrf.mxu0
      %v1023 = vadd.f32 0.0, %v1022
      %1024 = vmatmul.f32.gmra.mxu0 %v957
      %v1025 = vpop.f32.mrf.mxu0
      %v1026 = vadd.f32 0.0, %v1025
      %1027 = vmatmul.f32.gmra.mxu0 %v960
      %v1028 = vpop.f32.mrf.mxu0
      %v1029 = vadd.f32 0.0, %v1028
      %1030 = vmatmul.f32.gmra.mxu0 %v963
      %v1031 = vpop.f32.mrf.mxu0
      %v1032 = vadd.f32 0.0, %v1031
      %1033 = vmatmul.f32.gmra.mxu0 %v966
      %v1034 = vpop.f32.mrf.mxu0
      %v1035 = vadd.f32 0.0, %v1034
      %1036 = vmatmul.f32.gmra.mxu0 %v969
      %v1037 = vpop.f32.mrf.mxu0
      %v1038 = vadd.f32 0.0, %v1037
      %1039 = vmatmul.f32.gmra.mxu0 %v972
      %v1040 = vpop.f32.mrf.mxu0
      %v1041 = vadd.f32 0.0, %v1040
      %1042 = vmatmul.f32.gmra.mxu0 %v975
      %v1043 = vpop.f32.mrf.mxu0
      %v1044 = vadd.f32 0.0, %v1043
      %1045 = vmatmul.f32.gmra.mxu0 %v978
      %v1046 = vpop.f32.mrf.mxu0
      %v1047 = vadd.f32 0.0, %v1046
      %1048 = vmatmul.f32.gmra.mxu0 %v981
      %v1049 = vpop.f32.mrf.mxu0
      %v1050 = vadd.f32 0.0, %v1049
      %1051 = vmatmul.f32.gmra.mxu0 %v984
      %v1052 = vpop.f32.mrf.mxu0
      %v1053 = vadd.f32 0.0, %v1052
      %1054 = vmatmul.f32.gmra.mxu0 %v987
      %v1055 = vpop.f32.mrf.mxu0
      %v1056 = vadd.f32 0.0, %v1055
      %1057 = vmatmul.f32.gmra.mxu0 %v990
      %v1058 = vpop.f32.mrf.mxu0
      %v1059 = vadd.f32 0.0, %v1058
      %1060 = vmatmul.f32.gmra.mxu0 %v993
      %v1061 = vpop.f32.mrf.mxu0
      %v1062 = vadd.f32 0.0, %v1061
      %1063 = vdwg.mxu0
      %vm1064 = vcmask 64512
      %v1065 = vsel %vm1064, %v1017, 0.0
      %v1066 = vsel %vm1064, %v1020, 0.0
      %v1067 = vadd.f32 %v1065, %v1066
      %v1068 = vsel %vm1064, %v1023, 0.0
      %v1069 = vadd.f32 %v1067, %v1068
      %v1070 = vsel %vm1064, %v1026, 0.0
      %v1071 = vadd.f32 %v1069, %v1070
      %v1072 = vsel %vm1064, %v1029, 0.0
      %v1073 = vadd.f32 %v1071, %v1072
      %v1074 = vsel %vm1064, %v1032, 0.0
      %v1075 = vadd.f32 %v1073, %v1074
      %v1076 = vsel %vm1064, %v1035, 0.0
      %v1077 = vadd.f32 %v1075, %v1076
      %v1078 = vsel %vm1064, %v1038, 0.0
      %v1079 = vadd.f32 %v1077, %v1078
      %v1080 = vsel %vm1064, %v1041, 0.0
      %v1081 = vadd.f32 %v1079, %v1080
      %v1082 = vsel %vm1064, %v1044, 0.0
      %v1083 = vadd.f32 %v1081, %v1082
      %v1084 = vsel %vm1064, %v1047, 0.0
      %v1085 = vadd.f32 %v1083, %v1084
      %v1086 = vsel %vm1064, %v1050, 0.0
      %v1087 = vadd.f32 %v1085, %v1086
      %v1088 = vsel %vm1064, %v1053, 0.0
      %v1089 = vadd.f32 %v1087, %v1088
      %v1090 = vsel %vm1064, %v1056, 0.0
      %v1091 = vadd.f32 %v1089, %v1090
      %v1092 = vsel %vm1064, %v1059, 0.0
      %v1093 = vadd.f32 %v1091, %v1092
      %v1094 = vsel %vm1064, %v1062, 0.0
      %v1095 = vadd.f32 %v1093, %v1094
      %v1096 = vrot.slane %v1095, 4
      %v1097 = vadd.f32 %v1095, %v1096
      %v1098 = vrot.slane %v1097, 2
      %v1099 = vadd.f32 %v1097, %v1098
      %v1100 = vrot.slane %v1099, 1
      %v1101 = vadd.f32 %v1099, %v1100
      %vm1102 = vcmask 57344
      %1103 = vst.msk [vmem:[%s225] sm:$0x1] %vm1102, %v1101
      %v1104 = vmul.f32 %v1017, %v1017
      %v1105 = vmul.f32 %v1020, %v1020
      %v1106 = vmul.f32 %v1023, %v1023
      %v1107 = vmul.f32 %v1026, %v1026
      %v1108 = vmul.f32 %v1029, %v1029
      %v1109 = vmul.f32 %v1032, %v1032
      %v1110 = vmul.f32 %v1035, %v1035
      %v1111 = vmul.f32 %v1038, %v1038
      %v1112 = vmul.f32 %v1041, %v1041
      %v1113 = vmul.f32 %v1044, %v1044
      %v1114 = vmul.f32 %v1047, %v1047
      %v1115 = vmul.f32 %v1050, %v1050
      %v1116 = vmul.f32 %v1053, %v1053
      %v1117 = vmul.f32 %v1056, %v1056
      %v1118 = vmul.f32 %v1059, %v1059
      %v1119 = vmul.f32 %v1062, %v1062
      %v1120 = vsel %vm1064, %v1104, 0.0
      %v1121 = vsel %vm1064, %v1105, 0.0
      %v1122 = vadd.f32 %v1120, %v1121
      %v1123 = vsel %vm1064, %v1106, 0.0
      %v1124 = vadd.f32 %v1122, %v1123
      %v1125 = vsel %vm1064, %v1107, 0.0
      %v1126 = vadd.f32 %v1124, %v1125
      %v1127 = vsel %vm1064, %v1108, 0.0
      %v1128 = vadd.f32 %v1126, %v1127
      %v1129 = vsel %vm1064, %v1109, 0.0
      %v1130 = vadd.f32 %v1128, %v1129
      %v1131 = vsel %vm1064, %v1110, 0.0
      %v1132 = vadd.f32 %v1130, %v1131
      %v1133 = vsel %vm1064, %v1111, 0.0
      %v1134 = vadd.f32 %v1132, %v1133
      %v1135 = vsel %vm1064, %v1112, 0.0
      %v1136 = vadd.f32 %v1134, %v1135
      %v1137 = vsel %vm1064, %v1113, 0.0
      %v1138 = vadd.f32 %v1136, %v1137
      %v1139 = vsel %vm1064, %v1114, 0.0
      %v1140 = vadd.f32 %v1138, %v1139
      %v1141 = vsel %vm1064, %v1115, 0.0
      %v1142 = vadd.f32 %v1140, %v1141
      %v1143 = vsel %vm1064, %v1116, 0.0
      %v1144 = vadd.f32 %v1142, %v1143
      %v1145 = vsel %vm1064, %v1117, 0.0
      %v1146 = vadd.f32 %v1144, %v1145
      %v1147 = vsel %vm1064, %v1118, 0.0
      %v1148 = vadd.f32 %v1146, %v1147
      %v1149 = vsel %vm1064, %v1119, 0.0
      %v1150 = vadd.f32 %v1148, %v1149
      %v1151 = vrot.slane %v1150, 4
      %v1152 = vadd.f32 %v1150, %v1151
      %v1153 = vrot.slane %v1152, 2
      %v1154 = vadd.f32 %v1152, %v1153
      %v1155 = vrot.slane %v1154, 1
      %v1156 = vadd.f32 %v1154, %v1155
      %1157 = vst.msk [vmem:[%s225 + $0x1] sm:$0x1] %vm1102, %v1156
      %1158 = vxpose.xlu0.b32.start [1/16] %v1017, 128
      %1159 = vxpose.xlu0.b32.cont [2/16] %v1020, 128
      %1160 = vxpose.xlu0.b32.cont [3/16] %v1023, 128
      %1161 = vxpose.xlu0.b32.cont [4/16] %v1026, 128
      %1162 = vxpose.xlu0.b32.cont [5/16] %v1029, 128
      %1163 = vxpose.xlu0.b32.cont [6/16] %v1032, 128
      %1164 = vxpose.xlu0.b32.cont [7/16] %v1035, 128
      %1165 = vxpose.xlu0.b32.cont [8/16] %v1038, 128
      %1166 = vxpose.xlu0.b32.cont [9/16] %v1041, 128
      %1167 = vxpose.xlu0.b32.cont [10/16] %v1044, 128
      %1168 = vxpose.xlu0.b32.cont [11/16] %v1047, 128
      %1169 = vxpose.xlu0.b32.cont [12/16] %v1050, 128
      %1170 = vxpose.xlu0.b32.cont [13/16] %v1053, 128
      %1171 = vxpose.xlu0.b32.cont [14/16] %v1056, 128
      %1172 = vxpose.xlu0.b32.cont [15/16] %v1059, 128
      %1173 = vxpose.xlu0.b32.end [16/16] %v1062, 128
      %v1174 = vpop.trf.xlu0
      %v1175 = vpop.trf.xlu0
      %v1176 = vpop.trf.xlu0
      %v1177 = vpop.trf.xlu0
      %v1178 = vpop.trf.xlu0
      %v1179 = vpop.trf.xlu0
      %v1180 = vpop.trf.xlu0
      %v1181 = vpop.trf.xlu0
      %v1182 = vpop.trf.xlu0
      %v1183 = vpop.trf.xlu0
      %v1184 = vpop.trf.xlu0
      %v1185 = vpop.trf.xlu0
      %v1186 = vpop.trf.xlu0
      %v1187 = vpop.trf.xlu0
      %v1188 = vpop.trf.xlu0
      %v1189 = vpop.trf.xlu0
      %1190 = vst [vmem:[%s217] sm:$0xff] %v1174
      %p1191 = scmp.lt.s32.totalorder %s19, 1
      %s1192 = scalar_select %p1191, %s19, 1
      %p1193 = scmp.lt.s32.totalorder %s20, 1
      %s1194 = scalar_select %p1193, %s20, 1
      %s1195 = smul.addr %s1192, 2
      %s1196 = sadd.s32 %s1194, %s1195
      %s1197 = smul.addr %s1196, 8
      %s1198 = scalar_lea.vmem %s2, %s1197
      %p1199 = scmp.lt.s32.totalorder %s19, 1
      %s1200 = scalar_select %p1199, %s19, 1
      %p1201 = scmp.lt.s32.totalorder %s20, 1
      %s1202 = scalar_select %p1201, %s20, 1
      %s1203 = smul.addr %s1200, 2
      %s1204 = sadd.s32 %s1202, %s1203
      %s1205 = smul.addr %s1204, 2
      %s1206 = scalar_lea.vmem %s3, %s1205
      // Predicated region
      $region29: #{decode_block_forward.2} parent=27 // pred_check
        %p1207 = pneg %p96
      $region30: #{decode_block_forward.2} parent=27 // pred_check_branch
        %1209 = sbr.rel (%p1207) target = $region32
      $region31: #{decode_block_forward.2} parent=27 // pred_region
        _
      $region32: #{decode_block_forward.2} parent=27 // pred_fallthru
        _
      // Predicated region
      $region33: #{decode_block_forward.2} parent=27 // pred_check
        %p1210 = pneg %p124
      $region34: #{decode_block_forward.2} parent=27 // pred_check_branch
        %1212 = sbr.rel (%p1210) target = $region36
      $region35: #{decode_block_forward.2} parent=27 // pred_region
        _
      $region36: #{decode_block_forward.2} parent=27 // pred_fallthru
        _
    $region28: #{decode_block_forward.2} parent=5 // pred_fallthru
      _
    %p1213 = scmp.le.s32.totalorder 2, %s10
    // Predicated region
    $region37: #{decode_block_forward.2} parent=5 // pred_check
      %p1214 = pneg %p1213
    $region38: #{decode_block_forward.2} parent=5 // pred_check_branch
      %1216 = sbr.rel (%p1214) target = $region40
    $region39: #{decode_block_forward.2} parent=5 // pred_region
      %s1217 = ssub.s32 %s10, 2
      // Predicated region
      $region41: #{decode_block_forward.2} parent=39 // pred_check
        %p1218 = pneg %p102
      $region42: #{decode_block_forward.2} parent=39 // pred_check_branch
        %1220 = sbr.rel (%p1218) target = $region44
      $region43: #{decode_block_forward.2} parent=39 // pred_region
        %p1221 = scmp.lt.s32.totalorder %s21, 1
        %s1222 = scalar_select %p1221, %s21, 1
        %p1223 = scmp.lt.s32.totalorder %s22, 1
        %s1224 = scalar_select %p1223, %s22, 1
        %s1225 = smul.addr %s1222, 2
        %s1226 = sadd.s32 %s1224, %s1225
        %s1227 = smul.addr %s1226, 8
        %s1228 = scalar_lea.vmem %s2, %s1227
      $region44: #{decode_block_forward.2} parent=39 // pred_fallthru
        _
      // Predicated region
      $region45: #{decode_block_forward.2} parent=39 // pred_check
        %p1229 = pneg %p130
      $region46: #{decode_block_forward.2} parent=39 // pred_check_branch
        %1231 = sbr.rel (%p1229) target = $region48
      $region47: #{decode_block_forward.2} parent=39 // pred_region
        %p1232 = scmp.lt.s32.totalorder %s21, 1
        %s1233 = scalar_select %p1232, %s21, 1
        %p1234 = scmp.lt.s32.totalorder %s22, 1
        %s1235 = scalar_select %p1234, %s22, 1
        %s1236 = smul.addr %s1233, 2
        %s1237 = sadd.s32 %s1235, %s1236
        %s1238 = smul.addr %s1237, 2
        %s1239 = scalar_lea.vmem %s3, %s1238
      $region48: #{decode_block_forward.2} parent=39 // pred_fallthru
        _
    $region40: #{decode_block_forward.2} parent=5 // pred_fallthru
      _
  $region6: #{decode_block_forward.2} parent=0 // loop_footer
    %s14 = sadd.s32 1, %s10
  $region7: #{decode_block_forward.2} parent=0 // loop_footer_branch
    %9 = sbr.rel target = $region3
  $region8: #{decode_block_forward.2} parent=0 // loop_exit
    _

</llo_original>
